<compile_context>
chip_gen: v6e
topology: v6e:2x2x1
jax: 0.10.0
libtpu: 0.0.40
codegen_flags: <defaults>
</compile_context>

<pallas_src>
import functools

import jax
import jax.numpy as jnp
from jax.experimental import pallas as pl
from jax.experimental.pallas import tpu as pltpu

LRELU_SLOPE = 0.2
LANES = 128
SAMPLE_BLOCK_CAP = 16            # samples per grid step
VMEM_CAP = 48 * 1024 * 1024      # stays inside v7x's 64 MiB per-core VMEM


def _round_up(x, m):
    return ((x + m - 1) // m) * m


def _pick_sample_block(n, cap=SAMPLE_BLOCK_CAP):
    """Samples per grid step: >=2 grid blocks when possible (both v7x
    TensorCores busy), <= cap so per-step VMEM stays a few MiB."""
    nblocks = max(2, -(-n // cap))
    return max(1, -(-n // nblocks))


def _vmem_limit(block_bytes):
    # Double-buffered blocks + headroom for in-kernel intermediates, capped
    # below v7x's physical per-core budget; generous on 128 MiB parts.
    return int(min(VMEM_CAP, max(16 * 1024 * 1024, 4 * block_bytes)))


def _conv_geom(ho, wo, s_blk):
    """Row geometry of the polyphase conv layout.

    Per sample, rows are r = i*(wo+1) + j over the padded (ho+1, wo+1) output
    grid; tap (kh, kw) of output pixel (i, j) reads row r + (kh//2)*(wo+1) +
    (kw//2) of phase (kh%2, kw%2).  Rows with i==ho or j==wo are garbage and
    are dropped (or zero-weighted) outside the kernel.
    """
    rp = (ho + 1) * (wo + 1)                    # rows per sample
    rows_out = _round_up(s_blk * rp, 8)         # rows computed per block
    rows_in = _round_up(rows_out + wo + 2, 8)   # + max tap row offset
    return rp, rows_out, rows_in


def _build_components(x_nhwc, s_blk):
    """(N, H, W, C) -> (NB, rows_in, 4*C) f32 polyphase blocks.

    One XLA transpose/pad pass (~1x activation traffic) replaces the previous
    9x-replicating im2col; patch assembly happens on-chip in the kernel.
    Lane order is (ph, pw, c); rows are (sample-in-block, i, j).
    """
    n, h, w, c = x_nhwc.shape
    assert h % 2 == 0 and w % 2 == 0 and n % s_blk == 0
    ho, wo = h // 2, w // 2
    rp, rows_out, rows_in = _conv_geom(ho, wo, s_blk)
    nb = n // s_blk
    xp = jnp.pad(x_nhwc.astype(jnp.float32), ((0, 0), (1, 1), (1, 1), (0, 0)))
    xp = xp.reshape(n, ho + 1, 2, wo + 1, 2, c)
    xp = jnp.transpose(xp, (0, 1, 3, 2, 4, 5))          # (n, i, j, ph, pw, c)
    comp = xp.reshape(nb, s_blk * rp, 4 * c)
    comp = jnp.pad(comp, ((0, 0), (0, rows_in - s_blk * rp), (0, 0)))
    return comp, ho, wo, rp, rows_out, rows_in


def _prep_conv_weight(w):
    """PyTorch (Cout, Cin, 3, 3) -> (9*Cin, Co_pad) bf16, lane-padded."""
    co, ci, kh, kw = w.shape
    co_pad = _round_up(co, LANES)
    wm = jnp.transpose(w, (2, 3, 1, 0)).reshape(kh * kw * ci, co)
    wm = jnp.pad(wm, ((0, 0), (0, co_pad - co)))
    return wm.astype(jnp.bfloat16), co, co_pad


def _assemble_patches(x_ref, c, wo, rows_out):
    """In-VMEM im2col: 9 static slices of the polyphase block, concatenated
    along lanes into a single (rows_out, 9*c) tile (one assembled-K matmul
    instead of 9 shallow per-tap matmuls)."""
    slabs = []
    for kh in range(3):
        for kw in range(3):
            row_off = (kh // 2) * (wo + 1) + (kw // 2)
            lane_off = ((kh % 2) * 2 + (kw % 2)) * c
            slabs.append(
                x_ref[0, row_off:row_off + rows_out, lane_off:lane_off + c])
    return jnp.concatenate(slabs, axis=1).astype(jnp.bfloat16)


# ---------------------------------------------------------------------------
# Kernel A: 3x3 / stride-2 conv (in-kernel im2col) + LeakyReLU
# ---------------------------------------------------------------------------
def _conv_lrelu_kernel(x_ref, w_ref, o_ref, *, c, wo, rows_out):
    p = _assemble_patches(x_ref, c, wo, rows_out)
    y = jnp.dot(p, w_ref[...], preferred_element_type=jnp.float32)
    y = jnp.where(y > 0, y, LRELU_SLOPE * y)
    o_ref[0] = y.astype(o_ref.dtype)


def conv3x3s2_lrelu(x_nhwc, weight, s_blk):
    n = x_nhwc.shape[0]
    c = x_nhwc.shape[3]
    comp, ho, wo, rp, rows_out, rows_in = _build_components(x_nhwc, s_blk)
    nb = comp.shape[0]
    w_mat, co, co_pad = _prep_conv_weight(weight)
    k = w_mat.shape[0]

    block_bytes = (2 * rows_in * max(4 * c, LANES) * 4      # input (x2 buf)
                   + 2 * rows_out * co_pad * 2              # output (x2 buf)
                   + k * co_pad * 2)                        # weights

    out = pl.pallas_call(
        functools.partial(_conv_lrelu_kernel, c=c, wo=wo, rows_out=rows_out),
        out_shape=jax.ShapeDtypeStruct((nb, rows_out, co_pad), jnp.bfloat16),
        grid_spec=pltpu.PrefetchScalarGridSpec(
            num_scalar_prefetch=0,
            grid=(nb,),
            in_specs=[
                pl.BlockSpec((1, rows_in, 4 * c), lambda i: (i, 0, 0)),
                pl.BlockSpec((k, co_pad), lambda i: (0, 0)),   # resident
            ],
            out_specs=pl.BlockSpec((1, rows_out, co_pad), lambda i: (i, 0, 0)),
        ),
        compiler_params=pltpu.CompilerParams(
            dimension_semantics=("parallel",),
            vmem_limit_bytes=_vmem_limit(block_bytes),
        ),
    )(comp, w_mat)

    # Drop padded-grid garbage rows / padded lanes; XLA fuses this with the
    # next layer's polyphase re-layout, so one HBM round trip per activation.
    y = out[:, : s_blk * rp, :].reshape(n, ho + 1, wo + 1, co_pad)
    return y[:, :ho, :wo, :co]


# ---------------------------------------------------------------------------
# Kernel B: conv3 (in-kernel im2col) + LeakyReLU + flatten + Linear, fused,
#           gridded over sample blocks.
# ---------------------------------------------------------------------------
def _tail_kernel(x_ref, w_ref, wl_ref, g_ref, b_ref, o_ref, *, c, wo, rows_out):
    p = _assemble_patches(x_ref, c, wo, rows_out)
    y = jnp.dot(p, w_ref[...], preferred_element_type=jnp.float32)
    y = jnp.where(y > 0, y, LRELU_SLOPE * y)
    # Fused flatten + Linear: wl carries the linear weights laid out over the
    # conv3 output rows (zeros on garbage rows / padded lanes); g sums each
    # sample's rows.  Everything stays 2-D and MXU/XLU friendly.
    prod = y * wl_ref[...]
    per_sample = jnp.dot(g_ref[...], prod, preferred_element_type=jnp.float32)
    total = jnp.sum(per_sample, axis=1, keepdims=True)        # (s_blk, 1)
    o_ref[0] = total + b_ref[...]


def conv_lrelu_linear(x_nhwc, weight, w_lin, bias, s_blk):
    c = x_nhwc.shape[3]
    comp, ho, wo, rp, rows_out, rows_in = _build_components(x_nhwc, s_blk)
    nb = comp.shape[0]
    w_mat, co, co_pad = _prep_conv_weight(weight)
    k = w_mat.shape[0]

    # Linear weight (1, co*ho*wo) over PyTorch's (c, h, w) flatten order,
    # spread over the per-sample (ho+1, wo+1) row grid with zeros elsewhere.
    wl = w_lin.reshape(co, ho, wo)
    wl = jnp.transpose(wl, (1, 2, 0))                           # (h, w, c)
    wl = jnp.pad(wl, ((0, 1), (0, 1), (0, co_pad - co)))        # (ho+1, wo+1, co_pad)
    wl = jnp.tile(wl.reshape(rp, co_pad), (s_blk, 1))
    wl = jnp.pad(wl, ((0, rows_out - s_blk * rp), (0, 0))).astype(jnp.float32)

    # Per-sample row-group summation matrix.
    g = (jnp.arange(rows_out)[None, :] // rp) == jnp.arange(s_blk)[:, None]
    g = g.astype(jnp.float32)                                   # (s_blk, rows_out)

    bias_vec = jnp.full((1, LANES), bias, jnp.float32)

    block_bytes = (2 * rows_in * max(4 * c, LANES) * 4
                   + 2 * s_blk * LANES * 4
                   + k * co_pad * 2
                   + rows_out * co_pad * 4
                   + s_blk * rows_out * 4)

    return pl.pallas_call(
        functools.partial(_tail_kernel, c=c, wo=wo, rows_out=rows_out),
        out_shape=jax.ShapeDtypeStruct((nb, s_blk, LANES), jnp.float32),
        grid_spec=pltpu.PrefetchScalarGridSpec(
            num_scalar_prefetch=0,
            grid=(nb,),
            in_specs=[
                pl.BlockSpec((1, rows_in, 4 * c), lambda i: (i, 0, 0)),
                pl.BlockSpec((k, co_pad), lambda i: (0, 0)),
                pl.BlockSpec((rows_out, co_pad), lambda i: (0, 0)),
                pl.BlockSpec((s_blk, rows_out), lambda i: (0, 0)),
                pl.BlockSpec((1, LANES), lambda i: (0, 0)),
            ],
            out_specs=pl.BlockSpec((1, s_blk, LANES), lambda i: (i, 0, 0)),
        ),
        compiler_params=pltpu.CompilerParams(
            dimension_semantics=("parallel",),
            vmem_limit_bytes=_vmem_limit(block_bytes),
        ),
    )(comp, w_mat, wl, g, bias_vec)


# ---------------------------------------------------------------------------
# Full forward pass
# ---------------------------------------------------------------------------
def wgan_gp_discriminator_forward(x_nchw, params):
    n = x_nchw.shape[0]
    assert x_nchw.shape[2] == 32 and x_nchw.shape[3] == 32, (
        "Linear(4*4*4*ndf, 1) implies 32x32 inputs")
    x = jnp.transpose(x_nchw, (0, 2, 3, 1)).astype(jnp.bfloat16)  # NCHW->NHWC

    s_blk = _pick_sample_block(n)
    n_pad = _round_up(n, s_blk)
    if n_pad != n:
        x = jnp.pad(x, ((0, n_pad - n), (0, 0), (0, 0), (0, 0)))

    x = conv3x3s2_lrelu(x, params["conv1"], s_blk)   # (n_pad, 16, 16, ndf)
    x = conv3x3s2_lrelu(x, params["conv2"], s_blk)   # (n_pad,  8,  8, 2ndf)

    # conv3 + LeakyReLU + flatten + linear, fused.  (The reference module
    # hard-codes view(-1, 4*4*4*64); we implement the intended per-sample
    # flatten matching Linear(4*4*4*ndf, 1).)
    out = conv_lrelu_linear(x, params["conv3"], params["linear_w"],
                            params["linear_b"], s_blk)      # (nb, s_blk, 128)
    return out.reshape(n_pad, LANES)[:n, :1]                 # (N, 1)


# ---------------------------------------------------------------------------
# Deterministic parameter init (PyTorch-like shapes / scale)
# ---------------------------------------------------------------------------
def init_params(key, channels, ndf):
    keys = jax.random.split(key, 5)

    def u(k, shape, fan_in):
        bound = 1.0 / float(fan_in) ** 0.5
        return jax.random.uniform(k, shape, jnp.float32, -bound, bound)

    lin_in = 4 * 4 * 4 * ndf
    return {
        "conv1": u(keys[0], (ndf, channels, 3, 3), channels * 9),
        "conv2": u(keys[1], (ndf * 2, ndf, 3, 3), ndf * 9),
        "conv3": u(keys[2], (ndf * 4, ndf * 2, 3, 3), ndf * 2 * 9),
        "linear_w": u(keys[3], (1, lin_in), lin_in),
        "linear_b": u(keys[4], (), lin_in),
    }


if __name__ == "__main__":
    channels = 3
    num_disc_filters = 8
    batch = 2
    spatial = 32  # 32 -> 16 -> 8 -> 4; flatten = 4*4*(4*ndf) = Linear in_features

    key = jax.random.PRNGKey(0)
    kx, kp = jax.random.split(key)
    x = jax.random.normal(kx, (batch, channels, spatial, spatial), jnp.float32)
    params = init_params(kp, channels, num_disc_filters)

    fwd = jax.jit(wgan_gp_discriminator_forward)
    out = fwd(x, params)
    out = jax.block_until_ready(out)
    assert out.shape == (batch, 1), out.shape
    print("KERNEL_OK")
</pallas_src>

<mosaic_0001>
module attributes {stable_mosaic.version = 11 : i64} {
  func.func @_conv_lrelu_kernel(%arg0: i32, %arg1: memref<1x320x12xf32, #tpu.memory_space<vmem>>, %arg2: memref<27x128xbf16, #tpu.memory_space<vmem>>, %arg3: memref<1x296x128xbf16, #tpu.memory_space<vmem>>) attributes {dimension_semantics = [#tpu.dimension_semantics<parallel>], iteration_bounds = array<i64: 2>, scalar_prefetch = 0 : i64, scratch_operands = 0 : i64, tpu.core_type = #tpu.core_type<tc>, window_params = [{transform_indices = @transform_0, window_bounds = array<i64: 1, 320, 12>}, {pipeline_mode = #tpu.pipeline_mode<synchronous>, transform_indices = @transform_1, window_bounds = array<i64: 27, 128>}, {transform_indices = @transform_2, window_bounds = array<i64: 1, 296, 128>}]} {
    %c0 = arith.constant 0 : index
    %c0_0 = arith.constant 0 : index
    %c0_1 = arith.constant 0 : index
    %0 = vector.load %arg1[%c0, %c0_0, %c0_1] : memref<1x320x12xf32, #tpu.memory_space<vmem>>, vector<1x296x3xf32>
    %1 = vector.shape_cast %0 : vector<1x296x3xf32> to vector<296x3xf32>
    %c0_2 = arith.constant 0 : index
    %c0_3 = arith.constant 0 : index
    %c3 = arith.constant 3 : index
    %2 = vector.load %arg1[%c0_2, %c0_3, %c3] : memref<1x320x12xf32, #tpu.memory_space<vmem>>, vector<1x296x3xf32>
    %3 = vector.shape_cast %2 : vector<1x296x3xf32> to vector<296x3xf32>
    %c0_4 = arith.constant 0 : index
    %c1 = arith.constant 1 : index
    %c0_5 = arith.constant 0 : index
    %4 = vector.load %arg1[%c0_4, %c1, %c0_5] : memref<1x320x12xf32, #tpu.memory_space<vmem>>, vector<1x296x3xf32>
    %5 = vector.shape_cast %4 : vector<1x296x3xf32> to vector<296x3xf32>
    %c0_6 = arith.constant 0 : index
    %c0_7 = arith.constant 0 : index
    %c6 = arith.constant 6 : index
    %6 = vector.load %arg1[%c0_6, %c0_7, %c6] : memref<1x320x12xf32, #tpu.memory_space<vmem>>, vector<1x296x3xf32>
    %7 = vector.shape_cast %6 : vector<1x296x3xf32> to vector<296x3xf32>
    %c0_8 = arith.constant 0 : index
    %c0_9 = arith.constant 0 : index
    %c9 = arith.constant 9 : index
    %8 = vector.load %arg1[%c0_8, %c0_9, %c9] : memref<1x320x12xf32, #tpu.memory_space<vmem>>, vector<1x296x3xf32>
    %9 = vector.shape_cast %8 : vector<1x296x3xf32> to vector<296x3xf32>
    %c0_10 = arith.constant 0 : index
    %c1_11 = arith.constant 1 : index
    %c6_12 = arith.constant 6 : index
    %10 = vector.load %arg1[%c0_10, %c1_11, %c6_12] : memref<1x320x12xf32, #tpu.memory_space<vmem>>, vector<1x296x3xf32>
    %11 = vector.shape_cast %10 : vector<1x296x3xf32> to vector<296x3xf32>
    %c0_13 = arith.constant 0 : index
    %c17 = arith.constant 17 : index
    %c0_14 = arith.constant 0 : index
    %12 = vector.load %arg1[%c0_13, %c17, %c0_14] : memref<1x320x12xf32, #tpu.memory_space<vmem>>, vector<1x296x3xf32>
    %13 = vector.shape_cast %12 : vector<1x296x3xf32> to vector<296x3xf32>
    %c0_15 = arith.constant 0 : index
    %c17_16 = arith.constant 17 : index
    %c3_17 = arith.constant 3 : index
    %14 = vector.load %arg1[%c0_15, %c17_16, %c3_17] : memref<1x320x12xf32, #tpu.memory_space<vmem>>, vector<1x296x3xf32>
    %15 = vector.shape_cast %14 : vector<1x296x3xf32> to vector<296x3xf32>
    %c0_18 = arith.constant 0 : index
    %c18 = arith.constant 18 : index
    %c0_19 = arith.constant 0 : index
    %16 = vector.load %arg1[%c0_18, %c18, %c0_19] : memref<1x320x12xf32, #tpu.memory_space<vmem>>, vector<1x296x3xf32>
    %17 = vector.shape_cast %16 : vector<1x296x3xf32> to vector<296x3xf32>
    %18 = tpu.concatenate %1, %3, %5, %7, %9, %11, %13, %15, %17 in 1 : vector<296x3xf32>, vector<296x3xf32>, vector<296x3xf32>, vector<296x3xf32>, vector<296x3xf32>, vector<296x3xf32>, vector<296x3xf32>, vector<296x3xf32>, vector<296x3xf32> -> vector<296x27xf32>
    %19 = arith.truncf %18 : vector<296x27xf32> to vector<296x27xbf16>
    %c0_20 = arith.constant 0 : index
    %c0_21 = arith.constant 0 : index
    %20 = vector.load %arg2[%c0_20, %c0_21] : memref<27x128xbf16, #tpu.memory_space<vmem>>, vector<27x128xbf16>
    %cst = arith.constant dense<0.000000e+00> : vector<296x128xf32>
    %21 = tpu.matmul %19, %20, %cst {dimension_numbers = #tpu.dot_dimension_numbers<[1], [0], [0], [1], [0, 0, 1, 1], [], []>} : vector<296x27xbf16>, vector<27x128xbf16>, vector<296x128xf32> -> vector<296x128xf32>
    %cst_22 = arith.constant 0.000000e+00 : f32
    %22 = vector.broadcast %cst_22 : f32 to vector<296x128xf32>
    %23 = arith.cmpf ogt, %21, %22 : vector<296x128xf32>
    %cst_23 = arith.constant 2.000000e-01 : f32
    %24 = vector.broadcast %cst_23 : f32 to vector<296x128xf32>
    %25 = arith.mulf %24, %21 : vector<296x128xf32>
    %26 = arith.select %23, %21, %25 : vector<296x128xi1>, vector<296x128xf32>
    %27 = arith.truncf %26 : vector<296x128xf32> to vector<296x128xbf16>
    %c0_24 = arith.constant 0 : index
    %c0_25 = arith.constant 0 : index
    %c0_26 = arith.constant 0 : index
    %28 = vector.load %arg3[%c0_24, %c0_25, %c0_26] : memref<1x296x128xbf16, #tpu.memory_space<vmem>>, vector<1x296x128xbf16>
    %29 = vector.shape_cast %28 : vector<1x296x128xbf16> to vector<296x128xbf16>
    %30 = vector.shape_cast %27 : vector<296x128xbf16> to vector<1x296x128xbf16>
    tpu.vector_store %arg3[%c0_24, %c0_25, %c0_26], %30 {strides = array<i32>} : memref<1x296x128xbf16, #tpu.memory_space<vmem>>, vector<1x296x128xbf16>,
    return
  }
  func.func @transform_0(%arg0: i32) -> (i32, i32, i32) {
    %c0_i32 = arith.constant 0 : i32
    %c0_i32_0 = arith.constant 0 : i32
    %c0_i32_1 = arith.constant 0 : i32
    return %arg0, %c0_i32, %c0_i32_0 : i32, i32, i32
  }
  func.func @transform_1(%arg0: i32) -> (i32, i32) {
    %c0_i32 = arith.constant 0 : i32
    %c0_i32_0 = arith.constant 0 : i32
    %c0_i32_1 = arith.constant 0 : i32
    return %c0_i32, %c0_i32_0 : i32, i32
  }
  func.func @transform_2(%arg0: i32) -> (i32, i32, i32) {
    %c0_i32 = arith.constant 0 : i32
    %c0_i32_0 = arith.constant 0 : i32
    %c0_i32_1 = arith.constant 0 : i32
    return %arg0, %c0_i32, %c0_i32_0 : i32, i32, i32
  }
}

module attributes {stable_mosaic.version = 11 : i64} {
  func.func @_conv_lrelu_kernel(%arg0: i32, %arg1: memref<1x104x32xf32, #tpu.memory_space<vmem>>, %arg2: memref<72x128xbf16, #tpu.memory_space<vmem>>, %arg3: memref<1x88x128xbf16, #tpu.memory_space<vmem>>) attributes {dimension_semantics = [#tpu.dimension_semantics<parallel>], iteration_bounds = array<i64: 2>, scalar_prefetch = 0 : i64, scratch_operands = 0 : i64, tpu.core_type = #tpu.core_type<tc>, window_params = [{transform_indices = @transform_0, window_bounds = array<i64: 1, 104, 32>}, {pipeline_mode = #tpu.pipeline_mode<synchronous>, transform_indices = @transform_1, window_bounds = array<i64: 72, 128>}, {transform_indices = @transform_2, window_bounds = array<i64: 1, 88, 128>}]} {
    %c0 = arith.constant 0 : index
    %c0_0 = arith.constant 0 : index
    %c0_1 = arith.constant 0 : index
    %0 = vector.load %arg1[%c0, %c0_0, %c0_1] : memref<1x104x32xf32, #tpu.memory_space<vmem>>, vector<1x88x8xf32>
    %1 = vector.shape_cast %0 : vector<1x88x8xf32> to vector<88x8xf32>
    %c0_2 = arith.constant 0 : index
    %c0_3 = arith.constant 0 : index
    %c8 = arith.constant 8 : index
    %2 = vector.load %arg1[%c0_2, %c0_3, %c8] : memref<1x104x32xf32, #tpu.memory_space<vmem>>, vector<1x88x8xf32>
    %3 = vector.shape_cast %2 : vector<1x88x8xf32> to vector<88x8xf32>
    %c0_4 = arith.constant 0 : index
    %c1 = arith.constant 1 : index
    %c0_5 = arith.constant 0 : index
    %4 = vector.load %arg1[%c0_4, %c1, %c0_5] : memref<1x104x32xf32, #tpu.memory_space<vmem>>, vector<1x88x8xf32>
    %5 = vector.shape_cast %4 : vector<1x88x8xf32> to vector<88x8xf32>
    %c0_6 = arith.constant 0 : index
    %c0_7 = arith.constant 0 : index
    %c16 = arith.constant 16 : index
    %6 = vector.load %arg1[%c0_6, %c0_7, %c16] : memref<1x104x32xf32, #tpu.memory_space<vmem>>, vector<1x88x8xf32>
    %7 = vector.shape_cast %6 : vector<1x88x8xf32> to vector<88x8xf32>
    %c0_8 = arith.constant 0 : index
    %c0_9 = arith.constant 0 : index
    %c24 = arith.constant 24 : index
    %8 = vector.load %arg1[%c0_8, %c0_9, %c24] : memref<1x104x32xf32, #tpu.memory_space<vmem>>, vector<1x88x8xf32>
    %9 = vector.shape_cast %8 : vector<1x88x8xf32> to vector<88x8xf32>
    %c0_10 = arith.constant 0 : index
    %c1_11 = arith.constant 1 : index
    %c16_12 = arith.constant 16 : index
    %10 = vector.load %arg1[%c0_10, %c1_11, %c16_12] : memref<1x104x32xf32, #tpu.memory_space<vmem>>, vector<1x88x8xf32>
    %11 = vector.shape_cast %10 : vector<1x88x8xf32> to vector<88x8xf32>
    %c0_13 = arith.constant 0 : index
    %c9 = arith.constant 9 : index
    %c0_14 = arith.constant 0 : index
    %12 = vector.load %arg1[%c0_13, %c9, %c0_14] : memref<1x104x32xf32, #tpu.memory_space<vmem>>, vector<1x88x8xf32>
    %13 = vector.shape_cast %12 : vector<1x88x8xf32> to vector<88x8xf32>
    %c0_15 = arith.constant 0 : index
    %c9_16 = arith.constant 9 : index
    %c8_17 = arith.constant 8 : index
    %14 = vector.load %arg1[%c0_15, %c9_16, %c8_17] : memref<1x104x32xf32, #tpu.memory_space<vmem>>, vector<1x88x8xf32>
    %15 = vector.shape_cast %14 : vector<1x88x8xf32> to vector<88x8xf32>
    %c0_18 = arith.constant 0 : index
    %c10 = arith.constant 10 : index
    %c0_19 = arith.constant 0 : index
    %16 = vector.load %arg1[%c0_18, %c10, %c0_19] : memref<1x104x32xf32, #tpu.memory_space<vmem>>, vector<1x88x8xf32>
    %17 = vector.shape_cast %16 : vector<1x88x8xf32> to vector<88x8xf32>
    %18 = tpu.concatenate %1, %3, %5, %7, %9, %11, %13, %15, %17 in 1 : vector<88x8xf32>, vector<88x8xf32>, vector<88x8xf32>, vector<88x8xf32>, vector<88x8xf32>, vector<88x8xf32>, vector<88x8xf32>, vector<88x8xf32>, vector<88x8xf32> -> vector<88x72xf32>
    %19 = arith.truncf %18 : vector<88x72xf32> to vector<88x72xbf16>
    %c0_20 = arith.constant 0 : index
    %c0_21 = arith.constant 0 : index
    %20 = vector.load %arg2[%c0_20, %c0_21] : memref<72x128xbf16, #tpu.memory_space<vmem>>, vector<72x128xbf16>
    %cst = arith.constant dense<0.000000e+00> : vector<88x128xf32>
    %21 = tpu.matmul %19, %20, %cst {dimension_numbers = #tpu.dot_dimension_numbers<[1], [0], [0], [1], [0, 0, 1, 1], [], []>} : vector<88x72xbf16>, vector<72x128xbf16>, vector<88x128xf32> -> vector<88x128xf32>
    %cst_22 = arith.constant 0.000000e+00 : f32
    %22 = vector.broadcast %cst_22 : f32 to vector<88x128xf32>
    %23 = arith.cmpf ogt, %21, %22 : vector<88x128xf32>
    %cst_23 = arith.constant 2.000000e-01 : f32
    %24 = vector.broadcast %cst_23 : f32 to vector<88x128xf32>
    %25 = arith.mulf %24, %21 : vector<88x128xf32>
    %26 = arith.select %23, %21, %25 : vector<88x128xi1>, vector<88x128xf32>
    %27 = arith.truncf %26 : vector<88x128xf32> to vector<88x128xbf16>
    %c0_24 = arith.constant 0 : index
    %c0_25 = arith.constant 0 : index
    %c0_26 = arith.constant 0 : index
    %28 = vector.load %arg3[%c0_24, %c0_25, %c0_26] : memref<1x88x128xbf16, #tpu.memory_space<vmem>>, vector<1x88x128xbf16>
    %29 = vector.shape_cast %28 : vector<1x88x128xbf16> to vector<88x128xbf16>
    %30 = vector.shape_cast %27 : vector<88x128xbf16> to vector<1x88x128xbf16>
    tpu.vector_store %arg3[%c0_24, %c0_25, %c0_26], %30 {strides = array<i32>} : memref<1x88x128xbf16, #tpu.memory_space<vmem>>, vector<1x88x128xbf16>,
    return
  }
  func.func @transform_0(%arg0: i32) -> (i32, i32, i32) {
    %c0_i32 = arith.constant 0 : i32
    %c0_i32_0 = arith.constant 0 : i32
    %c0_i32_1 = arith.constant 0 : i32
    return %arg0, %c0_i32, %c0_i32_0 : i32, i32, i32
  }
  func.func @transform_1(%arg0: i32) -> (i32, i32) {
    %c0_i32 = arith.constant 0 : i32
    %c0_i32_0 = arith.constant 0 : i32
    %c0_i32_1 = arith.constant 0 : i32
    return %c0_i32, %c0_i32_0 : i32, i32
  }
  func.func @transform_2(%arg0: i32) -> (i32, i32, i32) {
    %c0_i32 = arith.constant 0 : i32
    %c0_i32_0 = arith.constant 0 : i32
    %c0_i32_1 = arith.constant 0 : i32
    return %arg0, %c0_i32, %c0_i32_0 : i32, i32, i32
  }
}

module attributes {stable_mosaic.version = 11 : i64} {
  func.func @_tail_kernel(%arg0: i32, %arg1: memref<1x40x64xf32, #tpu.memory_space<vmem>>, %arg2: memref<144x128xbf16, #tpu.memory_space<vmem>>, %arg3: memref<32x128xf32, #tpu.memory_space<vmem>>, %arg4: memref<1x32xf32, #tpu.memory_space<vmem>>, %arg5: memref<1x128xf32, #tpu.memory_space<vmem>>, %arg6: memref<1x1x128xf32, #tpu.memory_space<vmem>>) attributes {dimension_semantics = [#tpu.dimension_semantics<parallel>], iteration_bounds = array<i64: 2>, scalar_prefetch = 0 : i64, scratch_operands = 0 : i64, tpu.core_type = #tpu.core_type<tc>, window_params = [{transform_indices = @transform_0, window_bounds = array<i64: 1, 40, 64>}, {pipeline_mode = #tpu.pipeline_mode<synchronous>, transform_indices = @transform_1, window_bounds = array<i64: 144, 128>}, {pipeline_mode = #tpu.pipeline_mode<synchronous>, transform_indices = @transform_2, window_bounds = array<i64: 32, 128>}, {pipeline_mode = #tpu.pipeline_mode<synchronous>, transform_indices = @transform_3, window_bounds = array<i64: 1, 32>}, {pipeline_mode = #tpu.pipeline_mode<synchronous>, transform_indices = @transform_4, window_bounds = array<i64: 1, 128>}, {transform_indices = @transform_5, window_bounds = array<i64: 1, 1, 128>}]} {
    %c0 = arith.constant 0 : index
    %c0_0 = arith.constant 0 : index
    %c0_1 = arith.constant 0 : index
    %0 = vector.load %arg1[%c0, %c0_0, %c0_1] : memref<1x40x64xf32, #tpu.memory_space<vmem>>, vector<1x32x16xf32>
    %1 = vector.shape_cast %0 : vector<1x32x16xf32> to vector<32x16xf32>
    %c0_2 = arith.constant 0 : index
    %c0_3 = arith.constant 0 : index
    %c16 = arith.constant 16 : index
    %2 = vector.load %arg1[%c0_2, %c0_3, %c16] : memref<1x40x64xf32, #tpu.memory_space<vmem>>, vector<1x32x16xf32>
    %3 = vector.shape_cast %2 : vector<1x32x16xf32> to vector<32x16xf32>
    %c0_4 = arith.constant 0 : index
    %c1 = arith.constant 1 : index
    %c0_5 = arith.constant 0 : index
    %4 = vector.load %arg1[%c0_4, %c1, %c0_5] : memref<1x40x64xf32, #tpu.memory_space<vmem>>, vector<1x32x16xf32>
    %5 = vector.shape_cast %4 : vector<1x32x16xf32> to vector<32x16xf32>
    %c0_6 = arith.constant 0 : index
    %c0_7 = arith.constant 0 : index
    %c32 = arith.constant 32 : index
    %6 = vector.load %arg1[%c0_6, %c0_7, %c32] : memref<1x40x64xf32, #tpu.memory_space<vmem>>, vector<1x32x16xf32>
    %7 = vector.shape_cast %6 : vector<1x32x16xf32> to vector<32x16xf32>
    %c0_8 = arith.constant 0 : index
    %c0_9 = arith.constant 0 : index
    %c48 = arith.constant 48 : index
    %8 = vector.load %arg1[%c0_8, %c0_9, %c48] : memref<1x40x64xf32, #tpu.memory_space<vmem>>, vector<1x32x16xf32>
    %9 = vector.shape_cast %8 : vector<1x32x16xf32> to vector<32x16xf32>
    %c0_10 = arith.constant 0 : index
    %c1_11 = arith.constant 1 : index
    %c32_12 = arith.constant 32 : index
    %10 = vector.load %arg1[%c0_10, %c1_11, %c32_12] : memref<1x40x64xf32, #tpu.memory_space<vmem>>, vector<1x32x16xf32>
    %11 = vector.shape_cast %10 : vector<1x32x16xf32> to vector<32x16xf32>
    %c0_13 = arith.constant 0 : index
    %c5 = arith.constant 5 : index
    %c0_14 = arith.constant 0 : index
    %12 = vector.load %arg1[%c0_13, %c5, %c0_14] : memref<1x40x64xf32, #tpu.memory_space<vmem>>, vector<1x32x16xf32>
    %13 = vector.shape_cast %12 : vector<1x32x16xf32> to vector<32x16xf32>
    %c0_15 = arith.constant 0 : index
    %c5_16 = arith.constant 5 : index
    %c16_17 = arith.constant 16 : index
    %14 = vector.load %arg1[%c0_15, %c5_16, %c16_17] : memref<1x40x64xf32, #tpu.memory_space<vmem>>, vector<1x32x16xf32>
    %15 = vector.shape_cast %14 : vector<1x32x16xf32> to vector<32x16xf32>
    %c0_18 = arith.constant 0 : index
    %c6 = arith.constant 6 : index
    %c0_19 = arith.constant 0 : index
    %16 = vector.load %arg1[%c0_18, %c6, %c0_19] : memref<1x40x64xf32, #tpu.memory_space<vmem>>, vector<1x32x16xf32>
    %17 = vector.shape_cast %16 : vector<1x32x16xf32> to vector<32x16xf32>
    %18 = tpu.concatenate %1, %3, %5, %7, %9, %11, %13, %15, %17 in 1 : vector<32x16xf32>, vector<32x16xf32>, vector<32x16xf32>, vector<32x16xf32>, vector<32x16xf32>, vector<32x16xf32>, vector<32x16xf32>, vector<32x16xf32>, vector<32x16xf32> -> vector<32x144xf32>
    %19 = arith.truncf %18 : vector<32x144xf32> to vector<32x144xbf16>
    %c0_20 = arith.constant 0 : index
    %c0_21 = arith.constant 0 : index
    %20 = vector.load %arg2[%c0_20, %c0_21] : memref<144x128xbf16, #tpu.memory_space<vmem>>, vector<144x128xbf16>
    %cst = arith.constant dense<0.000000e+00> : vector<32x128xf32>
    %21 = tpu.matmul %19, %20, %cst {dimension_numbers = #tpu.dot_dimension_numbers<[1], [0], [0], [1], [0, 0, 1, 1], [], []>} : vector<32x144xbf16>, vector<144x128xbf16>, vector<32x128xf32> -> vector<32x128xf32>
    %cst_22 = arith.constant 0.000000e+00 : f32
    %22 = vector.broadcast %cst_22 : f32 to vector<32x128xf32>
    %23 = arith.cmpf ogt, %21, %22 : vector<32x128xf32>
    %cst_23 = arith.constant 2.000000e-01 : f32
    %24 = vector.broadcast %cst_23 : f32 to vector<32x128xf32>
    %25 = arith.mulf %24, %21 : vector<32x128xf32>
    %26 = arith.select %23, %21, %25 : vector<32x128xi1>, vector<32x128xf32>
    %c0_24 = arith.constant 0 : index
    %c0_25 = arith.constant 0 : index
    %27 = vector.load %arg3[%c0_24, %c0_25] : memref<32x128xf32, #tpu.memory_space<vmem>>, vector<32x128xf32>
    %28 = arith.mulf %26, %27 : vector<32x128xf32>
    %c0_26 = arith.constant 0 : index
    %c0_27 = arith.constant 0 : index
    %29 = vector.load %arg4[%c0_26, %c0_27] : memref<1x32xf32, #tpu.memory_space<vmem>>, vector<1x32xf32>
    %cst_28 = arith.constant dense<0.000000e+00> : vector<1x128xf32>
    %30 = tpu.matmul %29, %28, %cst_28 {dimension_numbers = #tpu.dot_dimension_numbers<[1], [0], [0], [1], [0, 0, 1, 1], [], []>} : vector<1x32xf32>, vector<32x128xf32>, vector<1x128xf32> -> vector<1x128xf32>
    %cst_29 = arith.constant dense<0.000000e+00> : vector<1xf32>
    %31 = vector.multi_reduction <add>, %30, %cst_29 [1] : vector<1x128xf32> to vector<1xf32>
    %32 = vector.shape_cast %31 : vector<1xf32> to vector<1x1xf32>
    %c0_30 = arith.constant 0 : index
    %c0_31 = arith.constant 0 : index
    %33 = vector.load %arg5[%c0_30, %c0_31] : memref<1x128xf32, #tpu.memory_space<vmem>>, vector<1x128xf32>
    %34 = vector.broadcast %32 : vector<1x1xf32> to vector<1x128xf32>
    %35 = arith.addf %34, %33 : vector<1x128xf32>
    %c0_32 = arith.constant 0 : index
    %c0_33 = arith.constant 0 : index
    %c0_34 = arith.constant 0 : index
    %36 = vector.load %arg6[%c0_32, %c0_33, %c0_34] : memref<1x1x128xf32, #tpu.memory_space<vmem>>, vector<1x1x128xf32>
    %37 = vector.shape_cast %36 : vector<1x1x128xf32> to vector<1x128xf32>
    %38 = vector.shape_cast %35 : vector<1x128xf32> to vector<1x1x128xf32>
    tpu.vector_store %arg6[%c0_32, %c0_33, %c0_34], %38 {strides = array<i32>} : memref<1x1x128xf32, #tpu.memory_space<vmem>>, vector<1x1x128xf32>,
    return
  }
  func.func @transform_0(%arg0: i32) -> (i32, i32, i32) {
    %c0_i32 = arith.constant 0 : i32
    %c0_i32_0 = arith.constant 0 : i32
    %c0_i32_1 = arith.constant 0 : i32
    return %arg0, %c0_i32, %c0_i32_0 : i32, i32, i32
  }
  func.func @transform_1(%arg0: i32) -> (i32, i32) {
    %c0_i32 = arith.constant 0 : i32
    %c0_i32_0 = arith.constant 0 : i32
    %c0_i32_1 = arith.constant 0 : i32
    return %c0_i32, %c0_i32_0 : i32, i32
  }
  func.func @transform_2(%arg0: i32) -> (i32, i32) {
    %c0_i32 = arith.constant 0 : i32
    %c0_i32_0 = arith.constant 0 : i32
    %c0_i32_1 = arith.constant 0 : i32
    return %c0_i32, %c0_i32_0 : i32, i32
  }
  func.func @transform_3(%arg0: i32) -> (i32, i32) {
    %c0_i32 = arith.constant 0 : i32
    %c0_i32_0 = arith.constant 0 : i32
    %c0_i32_1 = arith.constant 0 : i32
    return %c0_i32, %c0_i32_0 : i32, i32
  }
  func.func @transform_4(%arg0: i32) -> (i32, i32) {
    %c0_i32 = arith.constant 0 : i32
    %c0_i32_0 = arith.constant 0 : i32
    %c0_i32_1 = arith.constant 0 : i32
    return %c0_i32, %c0_i32_0 : i32, i32
  }
  func.func @transform_5(%arg0: i32) -> (i32, i32, i32) {
    %c0_i32 = arith.constant 0 : i32
    %c0_i32_0 = arith.constant 0 : i32
    %c0_i32_1 = arith.constant 0 : i32
    return %arg0, %c0_i32, %c0_i32_0 : i32, i32, i32
  }
}

</mosaic_0001>

<llo_original>
// kernel: wgan_gp_discriminator_forward.3
$region0: #{wgan_gp_discriminator_forward.3}
  #allocation0 [shape = 'u32[]', space=smem, size = 0x4, offset = 0x4, fixed_abs, tag = 'smem constant byte address 0x4 - core index']
  #allocation1 [shape = 'u32[144,128]{1,0:T(1,128)}', space=vmem, size = 0x12000, scoped, tag = 'internal scratch']
  %s0 = inlined_call_operand.vmem [shape: f32[2,320,12], index: 0, kind: input, shape index: {}]
  %s1 = inlined_call_operand.vmem [shape: bf16[27,128], index: 1, kind: input, shape index: {}]
  %s2 = inlined_call_operand.vmem [shape: bf16[2,296,128], index: 2, kind: output, shape index: {}]
  %s3 = sld [smem:[#allocation0]]
  $region41: #{wgan_gp_discriminator_forward.3} parent=0
    _
  %s5 = ssub.s32 1, %s3
  %s6 = scalar_select 0, %s5, %s3
  loop: start=0, step=1, limit=4
  $region2: #{wgan_gp_discriminator_forward.3} parent=0 // loop_pre_header
    _
  $region3: #{wgan_gp_discriminator_forward.3} parent=0 // loop_header
    %s8 = sphi 0, %s12
    %p9 = scmp.ge.s32.totalorder %s8, 4
    %s18 = sphi 0, %s20
    %s21 = sphi 0, %s18
    %s22 = sphi 0, %s21
    %s38 = sphi 0, %s22
    %s42 = sphi 0, %s42
    %s44 = sphi 0, %s42
    %s45 = sphi 0, %s44
    %s59 = sphi 0, %s45
    %s65 = sphi 0, %s67
    %s68 = sphi 0, %s65
    %s69 = sphi 0, %s68
    %s85 = sphi 0, %s69
  $region4: #{wgan_gp_discriminator_forward.3} parent=0 // loop_header_branch
    %11 = sbr.rel (%p9) target = $region8
  $region5: #{wgan_gp_discriminator_forward.3} parent=0 // loop_body
    %s13 = ssub.s32 %s8, 1
    %s14 = ssub.s32 %s8, 2
    %s15 = sadd.s32 %s8, 1
    %s16 = ssub.s32 %s8, %s15
    %p17 = scmp.eq.s32.totalorder %s16, 0
    %s19 = sadd.s32 %s18, 1
    %s20 = scalar_select %p17, %s18, %s19
    %p23 = pneg %p17
    %p24 = scmp.eq.s32.totalorder %s8, 1
    %p25 = por %p23, %p24
    %p26 = scmp.ne.s32.totalorder %s18, %s21
    %p27 = scmp.eq.s32.totalorder %s8, 0
    %p28 = por %p26, %p27
    %p29 = scmp.ne.s32.totalorder %s18, %s21
    %p30 = scmp.eq.s32.totalorder %s13, 1
    %p31 = por %p29, %p30
    %p32 = scmp.ne.s32.totalorder %s21, %s22
    %p33 = scmp.eq.s32.totalorder %s13, 0
    %p34 = por %p32, %p33
    %p35 = scmp.ne.s32.totalorder %s21, %s22
    %p36 = scmp.eq.s32.totalorder %s14, 1
    %p37 = por %p35, %p36
    %p39 = scmp.ne.s32.totalorder %s22, %s38
    %p40 = scmp.eq.s32.totalorder %s14, 0
    %p41 = por %p39, %p40
    %s43 = sadd.s32 %s42, 1
    %p46 = scmp.eq.s32.totalorder %s8, 1
    %p47 = scmp.ne.s32.totalorder %s42, %s44
    %p48 = scmp.eq.s32.totalorder %s8, 0
    %p49 = por %p47, %p48
    %p50 = scmp.ne.s32.totalorder %s42, %s44
    %p51 = scmp.eq.s32.totalorder %s13, 1
    %p52 = por %p50, %p51
    %p53 = scmp.ne.s32.totalorder %s44, %s45
    %p54 = scmp.eq.s32.totalorder %s13, 0
    %p55 = por %p53, %p54
    %p56 = scmp.ne.s32.totalorder %s44, %s45
    %p57 = scmp.eq.s32.totalorder %s14, 1
    %p58 = por %p56, %p57
    %p60 = scmp.ne.s32.totalorder %s45, %s59
    %p61 = scmp.eq.s32.totalorder %s14, 0
    %p62 = por %p60, %p61
    %s63 = ssub.s32 %s8, %s15
    %p64 = scmp.eq.s32.totalorder %s63, 0
    %s66 = sadd.s32 %s65, 1
    %s67 = scalar_select %p64, %s65, %s66
    %p70 = pneg %p64
    %p71 = scmp.eq.s32.totalorder %s8, 1
    %p72 = por %p70, %p71
    %p73 = scmp.ne.s32.totalorder %s65, %s68
    %p74 = scmp.eq.s32.totalorder %s8, 0
    %p75 = por %p73, %p74
    %p76 = scmp.ne.s32.totalorder %s65, %s68
    %p77 = scmp.eq.s32.totalorder %s13, 1
    %p78 = por %p76, %p77
    %p79 = scmp.ne.s32.totalorder %s68, %s69
    %p80 = scmp.eq.s32.totalorder %s13, 0
    %p81 = por %p79, %p80
    %p82 = scmp.ne.s32.totalorder %s68, %s69
    %p83 = scmp.eq.s32.totalorder %s14, 1
    %p84 = por %p82, %p83
    %p86 = scmp.ne.s32.totalorder %s69, %s85
    %p87 = scmp.eq.s32.totalorder %s14, 0
    %p88 = por %p86, %p87
    %p89 = scmp.le.s32.totalorder 1, %s8
    %p90 = scmp.lt.s32.totalorder %s8, 3
    %p91 = pnand %p89, %p90
    %p92 = pneg %p91
    // Predicated region
    $region9: #{wgan_gp_discriminator_forward.3} parent=5 // pred_check
      _
    $region10: #{wgan_gp_discriminator_forward.3} parent=5 // pred_check_branch
      %94 = sbr.rel (%p91) target = $region12
    $region11: #{wgan_gp_discriminator_forward.3} parent=5 // pred_region
      %s95 = ssub.s32 %s8, 1
      // Predicated region
      $region13: #{wgan_gp_discriminator_forward.3} parent=11 // pred_check
        %p96 = pneg %p55
      $region14: #{wgan_gp_discriminator_forward.3} parent=11 // pred_check_branch
        %98 = sbr.rel (%p96) target = $region16
      $region15: #{wgan_gp_discriminator_forward.3} parent=11 // pred_region
        _
      $region16: #{wgan_gp_discriminator_forward.3} parent=11 // pred_fallthru
        _
    $region12: #{wgan_gp_discriminator_forward.3} parent=5 // pred_fallthru
      _
    %p99 = scmp.lt.s32.totalorder %s8, 2
    // Predicated region
    $region17: #{wgan_gp_discriminator_forward.3} parent=5 // pred_check
      %p100 = pneg %p99
    $region18: #{wgan_gp_discriminator_forward.3} parent=5 // pred_check_branch
      %102 = sbr.rel (%p100) target = $region20
    $region19: #{wgan_gp_discriminator_forward.3} parent=5 // pred_region
      // Predicated region
      $region21: #{wgan_gp_discriminator_forward.3} parent=19 // pred_check
        %p103 = pneg %p28
      $region22: #{wgan_gp_discriminator_forward.3} parent=19 // pred_check_branch
        %105 = sbr.rel (%p103) target = $region24
      $region23: #{wgan_gp_discriminator_forward.3} parent=19 // pred_region
        %p106 = scmp.lt.s32.totalorder %s8, 1
        %s107 = scalar_select %p106, %s8, 1
        %s108 = smul.addr %s107, 40
        %s109 = smul.addr %s108, 8
        %s110 = scalar_lea.vmem %s0, %s109
      $region24: #{wgan_gp_discriminator_forward.3} parent=19 // pred_fallthru
        _
    $region20: #{wgan_gp_discriminator_forward.3} parent=5 // pred_fallthru
      _
    %p111 = scmp.le.s32.totalorder 1, %s8
    %p112 = scmp.lt.s32.totalorder %s8, 3
    %p113 = pnand %p111, %p112
    %p114 = pneg %p113
    // Predicated region
    $region25: #{wgan_gp_discriminator_forward.3} parent=5 // pred_check
      _
    $region26: #{wgan_gp_discriminator_forward.3} parent=5 // pred_check_branch
      %116 = sbr.rel (%p113) target = $region28
    $region27: #{wgan_gp_discriminator_forward.3} parent=5 // pred_region
      %s117 = ssub.s32 %s8, 1
      %p118 = scmp.lt.s32.totalorder %s13, 1
      %s119 = scalar_select %p118, %s13, 1
      %s120 = smul.addr %s119, 40
      %s121 = smul.addr %s120, 8
      %s122 = scalar_lea.vmem %s0, %s121
      %p123 = pneg %p34
      %p124 = pneg %p31
      %p125 = pneg %p55
      %p126 = pneg %p52
      %p127 = pneg %p81
      %p128 = pneg %p78
      %p129 = scmp.lt.s32.totalorder %s13, 1
      %s130 = scalar_select %p129, %s13, 1
      %s131 = smul.addr %s130, 37
      %s132 = smul.addr %s131, 4
      %s133 = scalar_lea.vmem %s2, %s132
      %p134 = scmp.lt.s32.totalorder %s13, 1
      %s135 = scalar_select %p134, %s13, 1
      %s136 = smul.addr %s135, 40
      %s137 = smul.addr %s136, 8
      %s138 = scalar_lea.vmem %s0, %s137
      %p139 = scmp.lt.s32.totalorder %s13, 1
      %s140 = scalar_select %p139, %s13, 1
      %s141 = smul.addr %s140, 37
      %s142 = smul.addr %s141, 4
      %s143 = scalar_lea.vmem %s2, %s142
      %v145 = vld [vmem:[%s138] sm:$0xff]
      %v146 = vld [vmem:[%s138 + $0x8] sm:$0xff]
      %v147 = vld [vmem:[%s138 + $0x10] sm:$0xff]
      %v148 = vld [vmem:[%s138 + $0x18] sm:$0xff]
      %v149 = vld [vmem:[%s138 + $0x20] sm:$0xff]
      %v150 = vld [vmem:[%s138 + $0x28] sm:$0xff]
      %v151 = vld [vmem:[%s138 + $0x30] sm:$0xff]
      %v152 = vld [vmem:[%s138 + $0x38] sm:$0xff]
      %v153 = vld [vmem:[%s138 + $0x40] sm:$0xff]
      %v154 = vld [vmem:[%s138 + $0x48] sm:$0xff]
      %v155 = vld [vmem:[%s138 + $0x50] sm:$0xff]
      %v156 = vld [vmem:[%s138 + $0x58] sm:$0xff]
      %v157 = vld [vmem:[%s138 + $0x60] sm:$0xff]
      %v158 = vld [vmem:[%s138 + $0x68] sm:$0xff]
      %v159 = vld [vmem:[%s138 + $0x70] sm:$0xff]
      %v160 = vld [vmem:[%s138 + $0x78] sm:$0xff]
      %v161 = vld [vmem:[%s138 + $0x80] sm:$0xff]
      %v162 = vld [vmem:[%s138 + $0x88] sm:$0xff]
      %v163 = vld [vmem:[%s138 + $0x90] sm:$0xff]
      %v164 = vld [vmem:[%s138 + $0x98] sm:$0xff]
      %v165 = vld [vmem:[%s138 + $0xa0] sm:$0xff]
      %v166 = vld [vmem:[%s138 + $0xa8] sm:$0xff]
      %v167 = vld [vmem:[%s138 + $0xb0] sm:$0xff]
      %v168 = vld [vmem:[%s138 + $0xb8] sm:$0xff]
      %v169 = vld [vmem:[%s138 + $0xc0] sm:$0xff]
      %v170 = vld [vmem:[%s138 + $0xc8] sm:$0xff]
      %v171 = vld [vmem:[%s138 + $0xd0] sm:$0xff]
      %v172 = vld [vmem:[%s138 + $0xd8] sm:$0xff]
      %v173 = vld [vmem:[%s138 + $0xe0] sm:$0xff]
      %v174 = vld [vmem:[%s138 + $0xe8] sm:$0xff]
      %v175 = vld [vmem:[%s138 + $0xf0] sm:$0xff]
      %v176 = vld [vmem:[%s138 + $0xf8] sm:$0xff]
      %v177 = vld [vmem:[%s138 + $0x100] sm:$0xff]
      %v178 = vld [vmem:[%s138 + $0x108] sm:$0xff]
      %v179 = vld [vmem:[%s138 + $0x110] sm:$0xff]
      %v180 = vld [vmem:[%s138 + $0x118] sm:$0xff]
      %v181 = vld [vmem:[%s138 + $0x120] sm:$0xff]
      %v182 = vld [vmem:[%s138 + $0x1] sm:$0xff]
      %v183 = vld [vmem:[%s138 + $0x9] sm:$0xff]
      %v184 = vld [vmem:[%s138 + $0x11] sm:$0xff]
      %v185 = vld [vmem:[%s138 + $0x19] sm:$0xff]
      %v186 = vld [vmem:[%s138 + $0x21] sm:$0xff]
      %v187 = vld [vmem:[%s138 + $0x29] sm:$0xff]
      %v188 = vld [vmem:[%s138 + $0x31] sm:$0xff]
      %v189 = vld [vmem:[%s138 + $0x39] sm:$0xff]
      %v190 = vld [vmem:[%s138 + $0x41] sm:$0xff]
      %v191 = vld [vmem:[%s138 + $0x49] sm:$0xff]
      %v192 = vld [vmem:[%s138 + $0x51] sm:$0xff]
      %v193 = vld [vmem:[%s138 + $0x59] sm:$0xff]
      %v194 = vld [vmem:[%s138 + $0x61] sm:$0xff]
      %v195 = vld [vmem:[%s138 + $0x69] sm:$0xff]
      %v196 = vld [vmem:[%s138 + $0x71] sm:$0xff]
      %v197 = vld [vmem:[%s138 + $0x79] sm:$0xff]
      %v198 = vld [vmem:[%s138 + $0x81] sm:$0xff]
      %v199 = vld [vmem:[%s138 + $0x89] sm:$0xff]
      %v200 = vld [vmem:[%s138 + $0x91] sm:$0xff]
      %v201 = vld [vmem:[%s138 + $0x99] sm:$0xff]
      %v202 = vld [vmem:[%s138 + $0xa1] sm:$0xff]
      %v203 = vld [vmem:[%s138 + $0xa9] sm:$0xff]
      %v204 = vld [vmem:[%s138 + $0xb1] sm:$0xff]
      %v205 = vld [vmem:[%s138 + $0xb9] sm:$0xff]
      %v206 = vld [vmem:[%s138 + $0xc1] sm:$0xff]
      %v207 = vld [vmem:[%s138 + $0xc9] sm:$0xff]
      %v208 = vld [vmem:[%s138 + $0xd1] sm:$0xff]
      %v209 = vld [vmem:[%s138 + $0xd9] sm:$0xff]
      %v210 = vld [vmem:[%s138 + $0xe1] sm:$0xff]
      %v211 = vld [vmem:[%s138 + $0xe9] sm:$0xff]
      %v212 = vld [vmem:[%s138 + $0xf1] sm:$0xff]
      %v213 = vld [vmem:[%s138 + $0xf9] sm:$0xff]
      %v214 = vld [vmem:[%s138 + $0x101] sm:$0xff]
      %v215 = vld [vmem:[%s138 + $0x109] sm:$0xff]
      %v216 = vld [vmem:[%s138 + $0x111] sm:$0xff]
      %v217 = vld [vmem:[%s138 + $0x119] sm:$0xff]
      %v218 = vld [vmem:[%s138 + $0x121] sm:$0xff]
      %v219 = vld [vmem:[%s138 + $0x129] sm:$0xff]
      %v220 = vld [vmem:[%s138 + $0x131] sm:$0xff]
      %v221 = vld [vmem:[%s138 + $0x12] sm:$0xff]
      %v222 = vld [vmem:[%s138 + $0x1a] sm:$0xff]
      %v223 = vld [vmem:[%s138 + $0x22] sm:$0xff]
      %v224 = vld [vmem:[%s138 + $0x2a] sm:$0xff]
      %v225 = vld [vmem:[%s138 + $0x32] sm:$0xff]
      %v226 = vld [vmem:[%s138 + $0x3a] sm:$0xff]
      %v227 = vld [vmem:[%s138 + $0x42] sm:$0xff]
      %v228 = vld [vmem:[%s138 + $0x4a] sm:$0xff]
      %v229 = vld [vmem:[%s138 + $0x52] sm:$0xff]
      %v230 = vld [vmem:[%s138 + $0x5a] sm:$0xff]
      %v231 = vld [vmem:[%s138 + $0x62] sm:$0xff]
      %v232 = vld [vmem:[%s138 + $0x6a] sm:$0xff]
      %v233 = vld [vmem:[%s138 + $0x72] sm:$0xff]
      %v234 = vld [vmem:[%s138 + $0x7a] sm:$0xff]
      %v235 = vld [vmem:[%s138 + $0x82] sm:$0xff]
      %v236 = vld [vmem:[%s138 + $0x8a] sm:$0xff]
      %v237 = vld [vmem:[%s138 + $0x92] sm:$0xff]
      %v238 = vld [vmem:[%s138 + $0x9a] sm:$0xff]
      %v239 = vld [vmem:[%s138 + $0xa2] sm:$0xff]
      %v240 = vld [vmem:[%s138 + $0xaa] sm:$0xff]
      %v241 = vld [vmem:[%s138 + $0xb2] sm:$0xff]
      %v242 = vld [vmem:[%s138 + $0xba] sm:$0xff]
      %v243 = vld [vmem:[%s138 + $0xc2] sm:$0xff]
      %v244 = vld [vmem:[%s138 + $0xca] sm:$0xff]
      %v245 = vld [vmem:[%s138 + $0xd2] sm:$0xff]
      %v246 = vld [vmem:[%s138 + $0xda] sm:$0xff]
      %v247 = vld [vmem:[%s138 + $0xe2] sm:$0xff]
      %v248 = vld [vmem:[%s138 + $0xea] sm:$0xff]
      %v249 = vld [vmem:[%s138 + $0xf2] sm:$0xff]
      %v250 = vld [vmem:[%s138 + $0xfa] sm:$0xff]
      %v251 = vld [vmem:[%s138 + $0x102] sm:$0xff]
      %v252 = vld [vmem:[%s138 + $0x10a] sm:$0xff]
      %v253 = vld [vmem:[%s138 + $0x112] sm:$0xff]
      %v254 = vld [vmem:[%s138 + $0x11a] sm:$0xff]
      %v255 = vld [vmem:[%s138 + $0x122] sm:$0xff]
      %v256 = vld [vmem:[%s138 + $0x12a] sm:$0xff]
      %v257 = vld [vmem:[%s138 + $0x132] sm:$0xff]
      %295 = vrot.lane.b32.xlu0 %v182, 6
      %v296 = vpop.permute.xlu0 %295
      %297 = vrot.lane.b32.xlu0 %v183, 6
      %v298 = vpop.permute.xlu0 %297
      %299 = vrot.lane.b32.xlu0 %v184, 6
      %v300 = vpop.permute.xlu0 %299
      %301 = vrot.lane.b32.xlu0 %v185, 6
      %v302 = vpop.permute.xlu0 %301
      %303 = vrot.lane.b32.xlu0 %v186, 6
      %v304 = vpop.permute.xlu0 %303
      %305 = vrot.lane.b32.xlu0 %v187, 6
      %v306 = vpop.permute.xlu0 %305
      %307 = vrot.lane.b32.xlu0 %v188, 6
      %v308 = vpop.permute.xlu0 %307
      %309 = vrot.lane.b32.xlu0 %v189, 6
      %v310 = vpop.permute.xlu0 %309
      %311 = vrot.lane.b32.xlu0 %v190, 6
      %v312 = vpop.permute.xlu0 %311
      %313 = vrot.lane.b32.xlu0 %v191, 6
      %v314 = vpop.permute.xlu0 %313
      %315 = vrot.lane.b32.xlu0 %v192, 6
      %v316 = vpop.permute.xlu0 %315
      %317 = vrot.lane.b32.xlu0 %v193, 6
      %v318 = vpop.permute.xlu0 %317
      %319 = vrot.lane.b32.xlu0 %v194, 6
      %v320 = vpop.permute.xlu0 %319
      %321 = vrot.lane.b32.xlu0 %v195, 6
      %v322 = vpop.permute.xlu0 %321
      %323 = vrot.lane.b32.xlu0 %v196, 6
      %v324 = vpop.permute.xlu0 %323
      %325 = vrot.lane.b32.xlu0 %v197, 6
      %v326 = vpop.permute.xlu0 %325
      %327 = vrot.lane.b32.xlu0 %v198, 6
      %v328 = vpop.permute.xlu0 %327
      %329 = vrot.lane.b32.xlu0 %v199, 6
      %v330 = vpop.permute.xlu0 %329
      %331 = vrot.lane.b32.xlu0 %v200, 6
      %v332 = vpop.permute.xlu0 %331
      %333 = vrot.lane.b32.xlu0 %v201, 6
      %v334 = vpop.permute.xlu0 %333
      %335 = vrot.lane.b32.xlu0 %v202, 6
      %v336 = vpop.permute.xlu0 %335
      %337 = vrot.lane.b32.xlu0 %v203, 6
      %v338 = vpop.permute.xlu0 %337
      %339 = vrot.lane.b32.xlu0 %v204, 6
      %v340 = vpop.permute.xlu0 %339
      %341 = vrot.lane.b32.xlu0 %v205, 6
      %v342 = vpop.permute.xlu0 %341
      %343 = vrot.lane.b32.xlu0 %v206, 6
      %v344 = vpop.permute.xlu0 %343
      %345 = vrot.lane.b32.xlu0 %v207, 6
      %v346 = vpop.permute.xlu0 %345
      %347 = vrot.lane.b32.xlu0 %v208, 6
      %v348 = vpop.permute.xlu0 %347
      %349 = vrot.lane.b32.xlu0 %v209, 6
      %v350 = vpop.permute.xlu0 %349
      %351 = vrot.lane.b32.xlu0 %v210, 6
      %v352 = vpop.permute.xlu0 %351
      %353 = vrot.lane.b32.xlu0 %v211, 6
      %v354 = vpop.permute.xlu0 %353
      %355 = vrot.lane.b32.xlu0 %v212, 6
      %v356 = vpop.permute.xlu0 %355
      %357 = vrot.lane.b32.xlu0 %v213, 6
      %v358 = vpop.permute.xlu0 %357
      %359 = vrot.lane.b32.xlu0 %v214, 6
      %v360 = vpop.permute.xlu0 %359
      %361 = vrot.lane.b32.xlu0 %v215, 6
      %v362 = vpop.permute.xlu0 %361
      %363 = vrot.lane.b32.xlu0 %v216, 6
      %v364 = vpop.permute.xlu0 %363
      %365 = vrot.lane.b32.xlu0 %v217, 6
      %v366 = vpop.permute.xlu0 %365
      %367 = vrot.lane.b32.xlu0 %v218, 6
      %v368 = vpop.permute.xlu0 %367
      %443 = vrot.lane.b32.xlu0 %v145, 3
      %v444 = vpop.permute.xlu0 %443
      %445 = vrot.lane.b32.xlu0 %v146, 3
      %v446 = vpop.permute.xlu0 %445
      %447 = vrot.lane.b32.xlu0 %v147, 3
      %v448 = vpop.permute.xlu0 %447
      %449 = vrot.lane.b32.xlu0 %v148, 3
      %v450 = vpop.permute.xlu0 %449
      %451 = vrot.lane.b32.xlu0 %v149, 3
      %v452 = vpop.permute.xlu0 %451
      %453 = vrot.lane.b32.xlu0 %v150, 3
      %v454 = vpop.permute.xlu0 %453
      %455 = vrot.lane.b32.xlu0 %v151, 3
      %v456 = vpop.permute.xlu0 %455
      %457 = vrot.lane.b32.xlu0 %v152, 3
      %v458 = vpop.permute.xlu0 %457
      %459 = vrot.lane.b32.xlu0 %v153, 3
      %v460 = vpop.permute.xlu0 %459
      %461 = vrot.lane.b32.xlu0 %v154, 3
      %v462 = vpop.permute.xlu0 %461
      %463 = vrot.lane.b32.xlu0 %v155, 3
      %v464 = vpop.permute.xlu0 %463
      %465 = vrot.lane.b32.xlu0 %v156, 3
      %v466 = vpop.permute.xlu0 %465
      %467 = vrot.lane.b32.xlu0 %v157, 3
      %v468 = vpop.permute.xlu0 %467
      %469 = vrot.lane.b32.xlu0 %v158, 3
      %v470 = vpop.permute.xlu0 %469
      %471 = vrot.lane.b32.xlu0 %v159, 3
      %v472 = vpop.permute.xlu0 %471
      %473 = vrot.lane.b32.xlu0 %v160, 3
      %v474 = vpop.permute.xlu0 %473
      %475 = vrot.lane.b32.xlu0 %v161, 3
      %v476 = vpop.permute.xlu0 %475
      %477 = vrot.lane.b32.xlu0 %v162, 3
      %v478 = vpop.permute.xlu0 %477
      %479 = vrot.lane.b32.xlu0 %v163, 3
      %v480 = vpop.permute.xlu0 %479
      %481 = vrot.lane.b32.xlu0 %v164, 3
      %v482 = vpop.permute.xlu0 %481
      %483 = vrot.lane.b32.xlu0 %v165, 3
      %v484 = vpop.permute.xlu0 %483
      %485 = vrot.lane.b32.xlu0 %v166, 3
      %v486 = vpop.permute.xlu0 %485
      %487 = vrot.lane.b32.xlu0 %v167, 3
      %v488 = vpop.permute.xlu0 %487
      %489 = vrot.lane.b32.xlu0 %v168, 3
      %v490 = vpop.permute.xlu0 %489
      %491 = vrot.lane.b32.xlu0 %v169, 3
      %v492 = vpop.permute.xlu0 %491
      %493 = vrot.lane.b32.xlu0 %v170, 3
      %v494 = vpop.permute.xlu0 %493
      %495 = vrot.lane.b32.xlu0 %v171, 3
      %v496 = vpop.permute.xlu0 %495
      %497 = vrot.lane.b32.xlu0 %v172, 3
      %v498 = vpop.permute.xlu0 %497
      %499 = vrot.lane.b32.xlu0 %v173, 3
      %v500 = vpop.permute.xlu0 %499
      %501 = vrot.lane.b32.xlu0 %v174, 3
      %v502 = vpop.permute.xlu0 %501
      %503 = vrot.lane.b32.xlu0 %v175, 3
      %v504 = vpop.permute.xlu0 %503
      %505 = vrot.lane.b32.xlu0 %v176, 3
      %v506 = vpop.permute.xlu0 %505
      %507 = vrot.lane.b32.xlu0 %v177, 3
      %v508 = vpop.permute.xlu0 %507
      %509 = vrot.lane.b32.xlu0 %v178, 3
      %v510 = vpop.permute.xlu0 %509
      %511 = vrot.lane.b32.xlu0 %v179, 3
      %v512 = vpop.permute.xlu0 %511
      %513 = vrot.lane.b32.xlu0 %v180, 3
      %v514 = vpop.permute.xlu0 %513
      %515 = vrot.lane.b32.xlu0 %v181, 3
      %v516 = vpop.permute.xlu0 %515
      %554 = vrot.lane.b32.xlu0 %v182, 9
      %v555 = vpop.permute.xlu0 %554
      %556 = vrot.lane.b32.xlu0 %v183, 9
      %v557 = vpop.permute.xlu0 %556
      %558 = vrot.lane.b32.xlu0 %v184, 9
      %v559 = vpop.permute.xlu0 %558
      %560 = vrot.lane.b32.xlu0 %v185, 9
      %v561 = vpop.permute.xlu0 %560
      %562 = vrot.lane.b32.xlu0 %v186, 9
      %v563 = vpop.permute.xlu0 %562
      %564 = vrot.lane.b32.xlu0 %v187, 9
      %v565 = vpop.permute.xlu0 %564
      %566 = vrot.lane.b32.xlu0 %v188, 9
      %v567 = vpop.permute.xlu0 %566
      %568 = vrot.lane.b32.xlu0 %v189, 9
      %v569 = vpop.permute.xlu0 %568
      %570 = vrot.lane.b32.xlu0 %v190, 9
      %v571 = vpop.permute.xlu0 %570
      %572 = vrot.lane.b32.xlu0 %v191, 9
      %v573 = vpop.permute.xlu0 %572
      %574 = vrot.lane.b32.xlu0 %v192, 9
      %v575 = vpop.permute.xlu0 %574
      %576 = vrot.lane.b32.xlu0 %v193, 9
      %v577 = vpop.permute.xlu0 %576
      %578 = vrot.lane.b32.xlu0 %v194, 9
      %v579 = vpop.permute.xlu0 %578
      %580 = vrot.lane.b32.xlu0 %v195, 9
      %v581 = vpop.permute.xlu0 %580
      %582 = vrot.lane.b32.xlu0 %v196, 9
      %v583 = vpop.permute.xlu0 %582
      %584 = vrot.lane.b32.xlu0 %v197, 9
      %v585 = vpop.permute.xlu0 %584
      %586 = vrot.lane.b32.xlu0 %v198, 9
      %v587 = vpop.permute.xlu0 %586
      %588 = vrot.lane.b32.xlu0 %v199, 9
      %v589 = vpop.permute.xlu0 %588
      %590 = vrot.lane.b32.xlu0 %v200, 9
      %v591 = vpop.permute.xlu0 %590
      %592 = vrot.lane.b32.xlu0 %v201, 9
      %v593 = vpop.permute.xlu0 %592
      %594 = vrot.lane.b32.xlu0 %v202, 9
      %v595 = vpop.permute.xlu0 %594
      %596 = vrot.lane.b32.xlu0 %v203, 9
      %v597 = vpop.permute.xlu0 %596
      %598 = vrot.lane.b32.xlu0 %v204, 9
      %v599 = vpop.permute.xlu0 %598
      %600 = vrot.lane.b32.xlu0 %v205, 9
      %v601 = vpop.permute.xlu0 %600
      %602 = vrot.lane.b32.xlu0 %v206, 9
      %v603 = vpop.permute.xlu0 %602
      %604 = vrot.lane.b32.xlu0 %v207, 9
      %v605 = vpop.permute.xlu0 %604
      %606 = vrot.lane.b32.xlu0 %v208, 9
      %v607 = vpop.permute.xlu0 %606
      %608 = vrot.lane.b32.xlu0 %v209, 9
      %v609 = vpop.permute.xlu0 %608
      %610 = vrot.lane.b32.xlu0 %v210, 9
      %v611 = vpop.permute.xlu0 %610
      %612 = vrot.lane.b32.xlu0 %v211, 9
      %v613 = vpop.permute.xlu0 %612
      %614 = vrot.lane.b32.xlu0 %v212, 9
      %v615 = vpop.permute.xlu0 %614
      %616 = vrot.lane.b32.xlu0 %v213, 9
      %v617 = vpop.permute.xlu0 %616
      %618 = vrot.lane.b32.xlu0 %v214, 9
      %v619 = vpop.permute.xlu0 %618
      %620 = vrot.lane.b32.xlu0 %v215, 9
      %v621 = vpop.permute.xlu0 %620
      %622 = vrot.lane.b32.xlu0 %v216, 9
      %v623 = vpop.permute.xlu0 %622
      %624 = vrot.lane.b32.xlu0 %v217, 9
      %v625 = vpop.permute.xlu0 %624
      %626 = vrot.lane.b32.xlu0 %v218, 9
      %v627 = vpop.permute.xlu0 %626
      %667 = vrot.lane.b32.xlu0 %v184, 18
      %v668 = vpop.permute.xlu0 %667
      %669 = vrot.lane.b32.xlu0 %v185, 18
      %v670 = vpop.permute.xlu0 %669
      %671 = vrot.lane.b32.xlu0 %v186, 18
      %v672 = vpop.permute.xlu0 %671
      %673 = vrot.lane.b32.xlu0 %v187, 18
      %v674 = vpop.permute.xlu0 %673
      %675 = vrot.lane.b32.xlu0 %v188, 18
      %v676 = vpop.permute.xlu0 %675
      %677 = vrot.lane.b32.xlu0 %v189, 18
      %v678 = vpop.permute.xlu0 %677
      %679 = vrot.lane.b32.xlu0 %v190, 18
      %v680 = vpop.permute.xlu0 %679
      %681 = vrot.lane.b32.xlu0 %v191, 18
      %v682 = vpop.permute.xlu0 %681
      %683 = vrot.lane.b32.xlu0 %v192, 18
      %v684 = vpop.permute.xlu0 %683
      %685 = vrot.lane.b32.xlu0 %v193, 18
      %v686 = vpop.permute.xlu0 %685
      %687 = vrot.lane.b32.xlu0 %v194, 18
      %v688 = vpop.permute.xlu0 %687
      %689 = vrot.lane.b32.xlu0 %v195, 18
      %v690 = vpop.permute.xlu0 %689
      %691 = vrot.lane.b32.xlu0 %v196, 18
      %v692 = vpop.permute.xlu0 %691
      %693 = vrot.lane.b32.xlu0 %v197, 18
      %v694 = vpop.permute.xlu0 %693
      %695 = vrot.lane.b32.xlu0 %v198, 18
      %v696 = vpop.permute.xlu0 %695
      %697 = vrot.lane.b32.xlu0 %v199, 18
      %v698 = vpop.permute.xlu0 %697
      %699 = vrot.lane.b32.xlu0 %v200, 18
      %v700 = vpop.permute.xlu0 %699
      %701 = vrot.lane.b32.xlu0 %v201, 18
      %v702 = vpop.permute.xlu0 %701
      %703 = vrot.lane.b32.xlu0 %v202, 18
      %v704 = vpop.permute.xlu0 %703
      %705 = vrot.lane.b32.xlu0 %v203, 18
      %v706 = vpop.permute.xlu0 %705
      %707 = vrot.lane.b32.xlu0 %v204, 18
      %v708 = vpop.permute.xlu0 %707
      %709 = vrot.lane.b32.xlu0 %v205, 18
      %v710 = vpop.permute.xlu0 %709
      %711 = vrot.lane.b32.xlu0 %v206, 18
      %v712 = vpop.permute.xlu0 %711
      %713 = vrot.lane.b32.xlu0 %v207, 18
      %v714 = vpop.permute.xlu0 %713
      %715 = vrot.lane.b32.xlu0 %v208, 18
      %v716 = vpop.permute.xlu0 %715
      %717 = vrot.lane.b32.xlu0 %v209, 18
      %v718 = vpop.permute.xlu0 %717
      %719 = vrot.lane.b32.xlu0 %v210, 18
      %v720 = vpop.permute.xlu0 %719
      %721 = vrot.lane.b32.xlu0 %v211, 18
      %v722 = vpop.permute.xlu0 %721
      %723 = vrot.lane.b32.xlu0 %v212, 18
      %v724 = vpop.permute.xlu0 %723
      %725 = vrot.lane.b32.xlu0 %v213, 18
      %v726 = vpop.permute.xlu0 %725
      %727 = vrot.lane.b32.xlu0 %v214, 18
      %v728 = vpop.permute.xlu0 %727
      %729 = vrot.lane.b32.xlu0 %v215, 18
      %v730 = vpop.permute.xlu0 %729
      %731 = vrot.lane.b32.xlu0 %v216, 18
      %v732 = vpop.permute.xlu0 %731
      %733 = vrot.lane.b32.xlu0 %v217, 18
      %v734 = vpop.permute.xlu0 %733
      %735 = vrot.lane.b32.xlu0 %v218, 18
      %v736 = vpop.permute.xlu0 %735
      %737 = vrot.lane.b32.xlu0 %v219, 18
      %v738 = vpop.permute.xlu0 %737
      %739 = vrot.lane.b32.xlu0 %v220, 18
      %v740 = vpop.permute.xlu0 %739
      %815 = vrot.lane.b32.xlu0 %v221, 24
      %v816 = vpop.permute.xlu0 %815
      %817 = vrot.lane.b32.xlu0 %v222, 24
      %v818 = vpop.permute.xlu0 %817
      %819 = vrot.lane.b32.xlu0 %v223, 24
      %v820 = vpop.permute.xlu0 %819
      %821 = vrot.lane.b32.xlu0 %v224, 24
      %v822 = vpop.permute.xlu0 %821
      %823 = vrot.lane.b32.xlu0 %v225, 24
      %v824 = vpop.permute.xlu0 %823
      %825 = vrot.lane.b32.xlu0 %v226, 24
      %v826 = vpop.permute.xlu0 %825
      %827 = vrot.lane.b32.xlu0 %v227, 24
      %v828 = vpop.permute.xlu0 %827
      %829 = vrot.lane.b32.xlu0 %v228, 24
      %v830 = vpop.permute.xlu0 %829
      %831 = vrot.lane.b32.xlu0 %v229, 24
      %v832 = vpop.permute.xlu0 %831
      %833 = vrot.lane.b32.xlu0 %v230, 24
      %v834 = vpop.permute.xlu0 %833
      %835 = vrot.lane.b32.xlu0 %v231, 24
      %v836 = vpop.permute.xlu0 %835
      %837 = vrot.lane.b32.xlu0 %v232, 24
      %v838 = vpop.permute.xlu0 %837
      %839 = vrot.lane.b32.xlu0 %v233, 24
      %v840 = vpop.permute.xlu0 %839
      %841 = vrot.lane.b32.xlu0 %v234, 24
      %v842 = vpop.permute.xlu0 %841
      %843 = vrot.lane.b32.xlu0 %v235, 24
      %v844 = vpop.permute.xlu0 %843
      %845 = vrot.lane.b32.xlu0 %v236, 24
      %v846 = vpop.permute.xlu0 %845
      %847 = vrot.lane.b32.xlu0 %v237, 24
      %v848 = vpop.permute.xlu0 %847
      %849 = vrot.lane.b32.xlu0 %v238, 24
      %v850 = vpop.permute.xlu0 %849
      %851 = vrot.lane.b32.xlu0 %v239, 24
      %v852 = vpop.permute.xlu0 %851
      %853 = vrot.lane.b32.xlu0 %v240, 24
      %v854 = vpop.permute.xlu0 %853
      %855 = vrot.lane.b32.xlu0 %v241, 24
      %v856 = vpop.permute.xlu0 %855
      %857 = vrot.lane.b32.xlu0 %v242, 24
      %v858 = vpop.permute.xlu0 %857
      %859 = vrot.lane.b32.xlu0 %v243, 24
      %v860 = vpop.permute.xlu0 %859
      %861 = vrot.lane.b32.xlu0 %v244, 24
      %v862 = vpop.permute.xlu0 %861
      %863 = vrot.lane.b32.xlu0 %v245, 24
      %v864 = vpop.permute.xlu0 %863
      %865 = vrot.lane.b32.xlu0 %v246, 24
      %v866 = vpop.permute.xlu0 %865
      %867 = vrot.lane.b32.xlu0 %v247, 24
      %v868 = vpop.permute.xlu0 %867
      %869 = vrot.lane.b32.xlu0 %v248, 24
      %v870 = vpop.permute.xlu0 %869
      %871 = vrot.lane.b32.xlu0 %v249, 24
      %v872 = vpop.permute.xlu0 %871
      %873 = vrot.lane.b32.xlu0 %v250, 24
      %v874 = vpop.permute.xlu0 %873
      %875 = vrot.lane.b32.xlu0 %v251, 24
      %v876 = vpop.permute.xlu0 %875
      %877 = vrot.lane.b32.xlu0 %v252, 24
      %v878 = vpop.permute.xlu0 %877
      %879 = vrot.lane.b32.xlu0 %v253, 24
      %v880 = vpop.permute.xlu0 %879
      %881 = vrot.lane.b32.xlu0 %v254, 24
      %v882 = vpop.permute.xlu0 %881
      %883 = vrot.lane.b32.xlu0 %v255, 24
      %v884 = vpop.permute.xlu0 %883
      %885 = vrot.lane.b32.xlu0 %v256, 24
      %v886 = vpop.permute.xlu0 %885
      %887 = vrot.lane.b32.xlu0 %v257, 24
      %v888 = vpop.permute.xlu0 %887
      %vm926 = vcmask 48128
      %v927 = vsel %vm926, %v145, %v296
      %v928 = vsel %vm926, %v146, %v298
      %v929 = vsel %vm926, %v147, %v300
      %v930 = vsel %vm926, %v148, %v302
      %v931 = vsel %vm926, %v149, %v304
      %v932 = vsel %vm926, %v150, %v306
      %v933 = vsel %vm926, %v151, %v308
      %v934 = vsel %vm926, %v152, %v310
      %v935 = vsel %vm926, %v153, %v312
      %v936 = vsel %vm926, %v154, %v314
      %v937 = vsel %vm926, %v155, %v316
      %v938 = vsel %vm926, %v156, %v318
      %v939 = vsel %vm926, %v157, %v320
      %v940 = vsel %vm926, %v158, %v322
      %v941 = vsel %vm926, %v159, %v324
      %v942 = vsel %vm926, %v160, %v326
      %v943 = vsel %vm926, %v161, %v328
      %v944 = vsel %vm926, %v162, %v330
      %v945 = vsel %vm926, %v163, %v332
      %v946 = vsel %vm926, %v164, %v334
      %v947 = vsel %vm926, %v165, %v336
      %v948 = vsel %vm926, %v166, %v338
      %v949 = vsel %vm926, %v167, %v340
      %v950 = vsel %vm926, %v168, %v342
      %v951 = vsel %vm926, %v169, %v344
      %v952 = vsel %vm926, %v170, %v346
      %v953 = vsel %vm926, %v171, %v348
      %v954 = vsel %vm926, %v172, %v350
      %v955 = vsel %vm926, %v173, %v352
      %v956 = vsel %vm926, %v174, %v354
      %v957 = vsel %vm926, %v175, %v356
      %v958 = vsel %vm926, %v176, %v358
      %v959 = vsel %vm926, %v177, %v360
      %v960 = vsel %vm926, %v178, %v362
      %v961 = vsel %vm926, %v179, %v364
      %v962 = vsel %vm926, %v180, %v366
      %v963 = vsel %vm926, %v181, %v368
      %vm964 = vcmask 72704
      %v965 = vsel %vm964, %v927, %v444
      %v966 = vsel %vm964, %v928, %v446
      %v967 = vsel %vm964, %v929, %v448
      %v968 = vsel %vm964, %v930, %v450
      %v969 = vsel %vm964, %v931, %v452
      %v970 = vsel %vm964, %v932, %v454
      %v971 = vsel %vm964, %v933, %v456
      %v972 = vsel %vm964, %v934, %v458
      %v973 = vsel %vm964, %v935, %v460
      %v974 = vsel %vm964, %v936, %v462
      %v975 = vsel %vm964, %v937, %v464
      %v976 = vsel %vm964, %v938, %v466
      %v977 = vsel %vm964, %v939, %v468
      %v978 = vsel %vm964, %v940, %v470
      %v979 = vsel %vm964, %v941, %v472
      %v980 = vsel %vm964, %v942, %v474
      %v981 = vsel %vm964, %v943, %v476
      %v982 = vsel %vm964, %v944, %v478
      %v983 = vsel %vm964, %v945, %v480
      %v984 = vsel %vm964, %v946, %v482
      %v985 = vsel %vm964, %v947, %v484
      %v986 = vsel %vm964, %v948, %v486
      %v987 = vsel %vm964, %v949, %v488
      %v988 = vsel %vm964, %v950, %v490
      %v989 = vsel %vm964, %v951, %v492
      %v990 = vsel %vm964, %v952, %v494
      %v991 = vsel %vm964, %v953, %v496
      %v992 = vsel %vm964, %v954, %v498
      %v993 = vsel %vm964, %v955, %v500
      %v994 = vsel %vm964, %v956, %v502
      %v995 = vsel %vm964, %v957, %v504
      %v996 = vsel %vm964, %v958, %v506
      %v997 = vsel %vm964, %v959, %v508
      %v998 = vsel %vm964, %v960, %v510
      %v999 = vsel %vm964, %v961, %v512
      %v1000 = vsel %vm964, %v962, %v514
      %v1001 = vsel %vm964, %v963, %v516
      %vm1002 = vcmask 97280
      %v1003 = vsel %vm1002, %v965, %v444
      %v1004 = vsel %vm1002, %v966, %v446
      %v1005 = vsel %vm1002, %v967, %v448
      %v1006 = vsel %vm1002, %v968, %v450
      %v1007 = vsel %vm1002, %v969, %v452
      %v1008 = vsel %vm1002, %v970, %v454
      %v1009 = vsel %vm1002, %v971, %v456
      %v1010 = vsel %vm1002, %v972, %v458
      %v1011 = vsel %vm1002, %v973, %v460
      %v1012 = vsel %vm1002, %v974, %v462
      %v1013 = vsel %vm1002, %v975, %v464
      %v1014 = vsel %vm1002, %v976, %v466
      %v1015 = vsel %vm1002, %v977, %v468
      %v1016 = vsel %vm1002, %v978, %v470
      %v1017 = vsel %vm1002, %v979, %v472
      %v1018 = vsel %vm1002, %v980, %v474
      %v1019 = vsel %vm1002, %v981, %v476
      %v1020 = vsel %vm1002, %v982, %v478
      %v1021 = vsel %vm1002, %v983, %v480
      %v1022 = vsel %vm1002, %v984, %v482
      %v1023 = vsel %vm1002, %v985, %v484
      %v1024 = vsel %vm1002, %v986, %v486
      %v1025 = vsel %vm1002, %v987, %v488
      %v1026 = vsel %vm1002, %v988, %v490
      %v1027 = vsel %vm1002, %v989, %v492
      %v1028 = vsel %vm1002, %v990, %v494
      %v1029 = vsel %vm1002, %v991, %v496
      %v1030 = vsel %vm1002, %v992, %v498
      %v1031 = vsel %vm1002, %v993, %v500
      %v1032 = vsel %vm1002, %v994, %v502
      %v1033 = vsel %vm1002, %v995, %v504
      %v1034 = vsel %vm1002, %v996, %v506
      %v1035 = vsel %vm1002, %v997, %v508
      %v1036 = vsel %vm1002, %v998, %v510
      %v1037 = vsel %vm1002, %v999, %v512
      %v1038 = vsel %vm1002, %v1000, %v514
      %v1039 = vsel %vm1002, %v1001, %v516
      %vm1040 = vcmask 121856
      %v1041 = vsel %vm1040, %v1003, %v555
      %v1042 = vsel %vm1040, %v1004, %v557
      %v1043 = vsel %vm1040, %v1005, %v559
      %v1044 = vsel %vm1040, %v1006, %v561
      %v1045 = vsel %vm1040, %v1007, %v563
      %v1046 = vsel %vm1040, %v1008, %v565
      %v1047 = vsel %vm1040, %v1009, %v567
      %v1048 = vsel %vm1040, %v1010, %v569
      %v1049 = vsel %vm1040, %v1011, %v571
      %v1050 = vsel %vm1040, %v1012, %v573
      %v1051 = vsel %vm1040, %v1013, %v575
      %v1052 = vsel %vm1040, %v1014, %v577
      %v1053 = vsel %vm1040, %v1015, %v579
      %v1054 = vsel %vm1040, %v1016, %v581
      %v1055 = vsel %vm1040, %v1017, %v583
      %v1056 = vsel %vm1040, %v1018, %v585
      %v1057 = vsel %vm1040, %v1019, %v587
      %v1058 = vsel %vm1040, %v1020, %v589
      %v1059 = vsel %vm1040, %v1021, %v591
      %v1060 = vsel %vm1040, %v1022, %v593
      %v1061 = vsel %vm1040, %v1023, %v595
      %v1062 = vsel %vm1040, %v1024, %v597
      %v1063 = vsel %vm1040, %v1025, %v599
      %v1064 = vsel %vm1040, %v1026, %v601
      %v1065 = vsel %vm1040, %v1027, %v603
      %v1066 = vsel %vm1040, %v1028, %v605
      %v1067 = vsel %vm1040, %v1029, %v607
      %v1068 = vsel %vm1040, %v1030, %v609
      %v1069 = vsel %vm1040, %v1031, %v611
      %v1070 = vsel %vm1040, %v1032, %v613
      %v1071 = vsel %vm1040, %v1033, %v615
      %v1072 = vsel %vm1040, %v1034, %v617
      %v1073 = vsel %vm1040, %v1035, %v619
      %v1074 = vsel %vm1040, %v1036, %v621
      %v1075 = vsel %vm1040, %v1037, %v623
      %v1076 = vsel %vm1040, %v1038, %v625
      %v1077 = vsel %vm1040, %v1039, %v627
      %vm1078 = vcmask 146432
      %v1079 = vsel %vm1078, %v1041, %v668
      %v1080 = vsel %vm1078, %v1042, %v670
      %v1081 = vsel %vm1078, %v1043, %v672
      %v1082 = vsel %vm1078, %v1044, %v674
      %v1083 = vsel %vm1078, %v1045, %v676
      %v1084 = vsel %vm1078, %v1046, %v678
      %v1085 = vsel %vm1078, %v1047, %v680
      %v1086 = vsel %vm1078, %v1048, %v682
      %v1087 = vsel %vm1078, %v1049, %v684
      %v1088 = vsel %vm1078, %v1050, %v686
      %v1089 = vsel %vm1078, %v1051, %v688
      %v1090 = vsel %vm1078, %v1052, %v690
      %v1091 = vsel %vm1078, %v1053, %v692
      %v1092 = vsel %vm1078, %v1054, %v694
      %v1093 = vsel %vm1078, %v1055, %v696
      %v1094 = vsel %vm1078, %v1056, %v698
      %v1095 = vsel %vm1078, %v1057, %v700
      %v1096 = vsel %vm1078, %v1058, %v702
      %v1097 = vsel %vm1078, %v1059, %v704
      %v1098 = vsel %vm1078, %v1060, %v706
      %v1099 = vsel %vm1078, %v1061, %v708
      %v1100 = vsel %vm1078, %v1062, %v710
      %v1101 = vsel %vm1078, %v1063, %v712
      %v1102 = vsel %vm1078, %v1064, %v714
      %v1103 = vsel %vm1078, %v1065, %v716
      %v1104 = vsel %vm1078, %v1066, %v718
      %v1105 = vsel %vm1078, %v1067, %v720
      %v1106 = vsel %vm1078, %v1068, %v722
      %v1107 = vsel %vm1078, %v1069, %v724
      %v1108 = vsel %vm1078, %v1070, %v726
      %v1109 = vsel %vm1078, %v1071, %v728
      %v1110 = vsel %vm1078, %v1072, %v730
      %v1111 = vsel %vm1078, %v1073, %v732
      %v1112 = vsel %vm1078, %v1074, %v734
      %v1113 = vsel %vm1078, %v1075, %v736
      %v1114 = vsel %vm1078, %v1076, %v738
      %v1115 = vsel %vm1078, %v1077, %v740
      %vm1116 = vcmask 171008
      %v1117 = vsel %vm1116, %v1079, %v668
      %v1118 = vsel %vm1116, %v1080, %v670
      %v1119 = vsel %vm1116, %v1081, %v672
      %v1120 = vsel %vm1116, %v1082, %v674
      %v1121 = vsel %vm1116, %v1083, %v676
      %v1122 = vsel %vm1116, %v1084, %v678
      %v1123 = vsel %vm1116, %v1085, %v680
      %v1124 = vsel %vm1116, %v1086, %v682
      %v1125 = vsel %vm1116, %v1087, %v684
      %v1126 = vsel %vm1116, %v1088, %v686
      %v1127 = vsel %vm1116, %v1089, %v688
      %v1128 = vsel %vm1116, %v1090, %v690
      %v1129 = vsel %vm1116, %v1091, %v692
      %v1130 = vsel %vm1116, %v1092, %v694
      %v1131 = vsel %vm1116, %v1093, %v696
      %v1132 = vsel %vm1116, %v1094, %v698
      %v1133 = vsel %vm1116, %v1095, %v700
      %v1134 = vsel %vm1116, %v1096, %v702
      %v1135 = vsel %vm1116, %v1097, %v704
      %v1136 = vsel %vm1116, %v1098, %v706
      %v1137 = vsel %vm1116, %v1099, %v708
      %v1138 = vsel %vm1116, %v1100, %v710
      %v1139 = vsel %vm1116, %v1101, %v712
      %v1140 = vsel %vm1116, %v1102, %v714
      %v1141 = vsel %vm1116, %v1103, %v716
      %v1142 = vsel %vm1116, %v1104, %v718
      %v1143 = vsel %vm1116, %v1105, %v720
      %v1144 = vsel %vm1116, %v1106, %v722
      %v1145 = vsel %vm1116, %v1107, %v724
      %v1146 = vsel %vm1116, %v1108, %v726
      %v1147 = vsel %vm1116, %v1109, %v728
      %v1148 = vsel %vm1116, %v1110, %v730
      %v1149 = vsel %vm1116, %v1111, %v732
      %v1150 = vsel %vm1116, %v1112, %v734
      %v1151 = vsel %vm1116, %v1113, %v736
      %v1152 = vsel %vm1116, %v1114, %v738
      %v1153 = vsel %vm1116, %v1115, %v740
      %vm1154 = vcmask 195584
      %v1155 = vsel %vm1154, %v1117, %v816
      %v1156 = vsel %vm1154, %v1118, %v818
      %v1157 = vsel %vm1154, %v1119, %v820
      %v1158 = vsel %vm1154, %v1120, %v822
      %v1159 = vsel %vm1154, %v1121, %v824
      %v1160 = vsel %vm1154, %v1122, %v826
      %v1161 = vsel %vm1154, %v1123, %v828
      %v1162 = vsel %vm1154, %v1124, %v830
      %v1163 = vsel %vm1154, %v1125, %v832
      %v1164 = vsel %vm1154, %v1126, %v834
      %v1165 = vsel %vm1154, %v1127, %v836
      %v1166 = vsel %vm1154, %v1128, %v838
      %v1167 = vsel %vm1154, %v1129, %v840
      %v1168 = vsel %vm1154, %v1130, %v842
      %v1169 = vsel %vm1154, %v1131, %v844
      %v1170 = vsel %vm1154, %v1132, %v846
      %v1171 = vsel %vm1154, %v1133, %v848
      %v1172 = vsel %vm1154, %v1134, %v850
      %v1173 = vsel %vm1154, %v1135, %v852
      %v1174 = vsel %vm1154, %v1136, %v854
      %v1175 = vsel %vm1154, %v1137, %v856
      %v1176 = vsel %vm1154, %v1138, %v858
      %v1177 = vsel %vm1154, %v1139, %v860
      %v1178 = vsel %vm1154, %v1140, %v862
      %v1179 = vsel %vm1154, %v1141, %v864
      %v1180 = vsel %vm1154, %v1142, %v866
      %v1181 = vsel %vm1154, %v1143, %v868
      %v1182 = vsel %vm1154, %v1144, %v870
      %v1183 = vsel %vm1154, %v1145, %v872
      %v1184 = vsel %vm1154, %v1146, %v874
      %v1185 = vsel %vm1154, %v1147, %v876
      %v1186 = vsel %vm1154, %v1148, %v878
      %v1187 = vsel %vm1154, %v1149, %v880
      %v1188 = vsel %vm1154, %v1150, %v882
      %v1189 = vsel %vm1154, %v1151, %v884
      %v1190 = vsel %vm1154, %v1152, %v886
      %v1191 = vsel %vm1154, %v1153, %v888
      %v1192 = vpack.c.bf16 %v1156, %v1155
      %v1193 = vpack.c.bf16 %v1158, %v1157
      %v1194 = vpack.c.bf16 %v1160, %v1159
      %v1195 = vpack.c.bf16 %v1162, %v1161
      %v1196 = vpack.c.bf16 %v1164, %v1163
      %v1197 = vpack.c.bf16 %v1166, %v1165
      %v1198 = vpack.c.bf16 %v1168, %v1167
      %v1199 = vpack.c.bf16 %v1170, %v1169
      %v1200 = vpack.c.bf16 %v1172, %v1171
      %v1201 = vpack.c.bf16 %v1174, %v1173
      %v1202 = vpack.c.bf16 %v1176, %v1175
      %v1203 = vpack.c.bf16 %v1178, %v1177
      %v1204 = vpack.c.bf16 %v1180, %v1179
      %v1205 = vpack.c.bf16 %v1182, %v1181
      %v1206 = vpack.c.bf16 %v1184, %v1183
      %v1207 = vpack.c.bf16 %v1186, %v1185
      %v1208 = vpack.c.bf16 %v1188, %v1187
      %v1209 = vpack.c.bf16 %v1190, %v1189
      %v1210 = vpack.c.bf16 %v1191, %v1191
      %v1211 = vld [vmem:[%s1] sm:$0xf]
      %v1212 = vld [vmem:[%s1 + $0x4] sm:$0xf]
      %v1213 = vld [vmem:[%s1 + $0x8] sm:$0xf]
      %v1214 = vld [vmem:[%s1 + $0xc] sm:$0x3]
      %v1219 = vunpack.c.l.b16 %v1211
      %v1220 = vunpack.c.l.b16 %v1212
      %v1221 = vunpack.c.l.b16 %v1213
      %v1222 = vunpack.c.l.b16 %v1214
      %v1223 = vpack.c.b16 %v1220, %v1219
      %v1224 = vpack.c.b16 %v1222, %v1221
      %vm1226 = vcmask 220160
      %v1228 = vsel %vm1226, %v1192, 0
      %v1231 = vsel %vm1226, %v1193, 0
      %v1234 = vsel %vm1226, %v1194, 0
      %v1237 = vsel %vm1226, %v1195, 0
      %v1240 = vsel %vm1226, %v1196, 0
      %v1243 = vsel %vm1226, %v1197, 0
      %v1246 = vsel %vm1226, %v1198, 0
      %v1249 = vsel %vm1226, %v1199, 0
      %v1252 = vsel %vm1226, %v1200, 0
      %v1255 = vsel %vm1226, %v1201, 0
      %v1258 = vsel %vm1226, %v1202, 0
      %v1261 = vsel %vm1226, %v1203, 0
      %v1264 = vsel %vm1226, %v1204, 0
      %v1267 = vsel %vm1226, %v1205, 0
      %v1270 = vsel %vm1226, %v1206, 0
      %v1273 = vsel %vm1226, %v1207, 0
      %v1276 = vsel %vm1226, %v1208, 0
      %v1279 = vsel %vm1226, %v1209, 0
      %v1282 = vsel %vm1226, %v1210, 0
      %vm1284 = vcmask 1044480
      %vm1285 = vcmask 1045504
      %v1286 = vsel %vm1284, 4294967295, 65535
      %v1287 = vsel %vm1285, %v1286, 0
      %v1289 = vand.u32 %v1224, %v1287
      %1291 = vmatprep.subr.bf16.mxu0 0
      %1292 = vmatpush1.bf16.msra.mxu0 0
      %1293 = vmatprep.subr.bf16.mxu0 0
      %1294 = vmatpush1.bf16.msra.mxu0 0
      %1295 = vmatprep.subr.bf16.mxu0 0
      %1296 = vmatpush1.bf16.msra.mxu0 0
      %1297 = vmatprep.subr.bf16.mxu0 0
      %1298 = vmatpush1.bf16.msra.mxu0 0
      %1299 = vmatprep.subr.bf16.mxu0 0
      %1300 = vmatpush1.bf16.msra.mxu0 0
      %1301 = vmatprep.subr.bf16.mxu0 0
      %1302 = vmatpush1.bf16.msra.mxu0 0
      %1303 = vmatprep.subr.bf16.mxu0 0
      %1304 = vmatpush1.bf16.msra.mxu0 %v1289
      %1305 = vmatprep.subr.bf16.mxu0 0
      %1306 = vmatpush1.bf16.msra.mxu0 %v1223
      %1307 = vmatprep.subr.bf16.mxu0 0
      %1308 = vmatpush2.bf16.msra.mxu0 0
      %1309 = vmatprep.subr.bf16.mxu0 0
      %1310 = vmatpush2.bf16.msra.mxu0 0
      %1311 = vmatprep.subr.bf16.mxu0 0
      %1312 = vmatpush2.bf16.msra.mxu0 0
      %1313 = vmatprep.subr.bf16.mxu0 0
      %1314 = vmatpush2.bf16.msra.mxu0 0
      %1315 = vmatprep.subr.bf16.mxu0 0
      %1316 = vmatpush2.bf16.msra.mxu0 0
      %1317 = vmatprep.subr.bf16.mxu0 0
      %1318 = vmatpush2.bf16.msra.mxu0 0
      %1319 = vmatprep.subr.bf16.mxu0 0
      %1320 = vmatpush2.bf16.msra.mxu0 0
      %1321 = vmatprep.subr.bf16.mxu0 0
      %1322 = vmatpush2.bf16.msra.mxu0 0
      %1323 = vmatprep.mubr.bf16.mxu0 0
      %1324 = vmatmul.mubr.bf16.gmra.mxu0 %v1228
      %v1325 = vpop.f32.mrf.mxu0
      %v1326 = vadd.f32 0.0, %v1325
      %v1327 = vpop.f32.mrf.mxu0
      %v1328 = vpop.f32.mrf.mxu0
      %v1329 = vadd.f32 0.0, %v1328
      %v1330 = vpop.f32.mrf.mxu0
      %1331 = vmatprep.mubr.bf16.mxu0 0
      %1332 = vmatmul.mubr.bf16.gmra.mxu0 %v1231
      %v1333 = vpop.f32.mrf.mxu0
      %v1334 = vadd.f32 0.0, %v1333
      %v1335 = vpop.f32.mrf.mxu0
      %v1336 = vpop.f32.mrf.mxu0
      %v1337 = vadd.f32 0.0, %v1336
      %v1338 = vpop.f32.mrf.mxu0
      %1339 = vmatprep.mubr.bf16.mxu0 0
      %1340 = vmatmul.mubr.bf16.gmra.mxu0 %v1234
      %v1341 = vpop.f32.mrf.mxu0
      %v1342 = vadd.f32 0.0, %v1341
      %v1343 = vpop.f32.mrf.mxu0
      %v1344 = vpop.f32.mrf.mxu0
      %v1345 = vadd.f32 0.0, %v1344
      %v1346 = vpop.f32.mrf.mxu0
      %1347 = vmatprep.mubr.bf16.mxu0 0
      %1348 = vmatmul.mubr.bf16.gmra.mxu0 %v1237
      %v1349 = vpop.f32.mrf.mxu0
      %v1350 = vadd.f32 0.0, %v1349
      %v1351 = vpop.f32.mrf.mxu0
      %v1352 = vpop.f32.mrf.mxu0
      %v1353 = vadd.f32 0.0, %v1352
      %v1354 = vpop.f32.mrf.mxu0
      %1355 = vmatprep.mubr.bf16.mxu0 0
      %1356 = vmatmul.mubr.bf16.gmra.mxu0 %v1240
      %v1357 = vpop.f32.mrf.mxu0
      %v1358 = vadd.f32 0.0, %v1357
      %v1359 = vpop.f32.mrf.mxu0
      %v1360 = vpop.f32.mrf.mxu0
      %v1361 = vadd.f32 0.0, %v1360
      %v1362 = vpop.f32.mrf.mxu0
      %1363 = vmatprep.mubr.bf16.mxu0 0
      %1364 = vmatmul.mubr.bf16.gmra.mxu0 %v1243
      %v1365 = vpop.f32.mrf.mxu0
      %v1366 = vadd.f32 0.0, %v1365
      %v1367 = vpop.f32.mrf.mxu0
      %v1368 = vpop.f32.mrf.mxu0
      %v1369 = vadd.f32 0.0, %v1368
      %v1370 = vpop.f32.mrf.mxu0
      %1371 = vmatprep.mubr.bf16.mxu0 0
      %1372 = vmatmul.mubr.bf16.gmra.mxu0 %v1246
      %v1373 = vpop.f32.mrf.mxu0
      %v1374 = vadd.f32 0.0, %v1373
      %v1375 = vpop.f32.mrf.mxu0
      %v1376 = vpop.f32.mrf.mxu0
      %v1377 = vadd.f32 0.0, %v1376
      %v1378 = vpop.f32.mrf.mxu0
      %1379 = vmatprep.mubr.bf16.mxu0 0
      %1380 = vmatmul.mubr.bf16.gmra.mxu0 %v1249
      %v1381 = vpop.f32.mrf.mxu0
      %v1382 = vadd.f32 0.0, %v1381
      %v1383 = vpop.f32.mrf.mxu0
      %v1384 = vpop.f32.mrf.mxu0
      %v1385 = vadd.f32 0.0, %v1384
      %v1386 = vpop.f32.mrf.mxu0
      %1387 = vmatprep.mubr.bf16.mxu0 0
      %1388 = vmatmul.mubr.bf16.gmra.mxu0 %v1252
      %v1389 = vpop.f32.mrf.mxu0
      %v1390 = vadd.f32 0.0, %v1389
      %v1391 = vpop.f32.mrf.mxu0
      %v1392 = vpop.f32.mrf.mxu0
      %v1393 = vadd.f32 0.0, %v1392
      %v1394 = vpop.f32.mrf.mxu0
      %1395 = vmatprep.mubr.bf16.mxu0 0
      %1396 = vmatmul.mubr.bf16.gmra.mxu0 %v1255
      %v1397 = vpop.f32.mrf.mxu0
      %v1398 = vadd.f32 0.0, %v1397
      %v1399 = vpop.f32.mrf.mxu0
      %v1400 = vpop.f32.mrf.mxu0
      %v1401 = vadd.f32 0.0, %v1400
      %v1402 = vpop.f32.mrf.mxu0
      %1403 = vmatprep.mubr.bf16.mxu0 0
      %1404 = vmatmul.mubr.bf16.gmra.mxu0 %v1258
      %v1405 = vpop.f32.mrf.mxu0
      %v1406 = vadd.f32 0.0, %v1405
      %v1407 = vpop.f32.mrf.mxu0
      %v1408 = vpop.f32.mrf.mxu0
      %v1409 = vadd.f32 0.0, %v1408
      %v1410 = vpop.f32.mrf.mxu0
      %1411 = vmatprep.mubr.bf16.mxu0 0
      %1412 = vmatmul.mubr.bf16.gmra.mxu0 %v1261
      %v1413 = vpop.f32.mrf.mxu0
      %v1414 = vadd.f32 0.0, %v1413
      %v1415 = vpop.f32.mrf.mxu0
      %v1416 = vpop.f32.mrf.mxu0
      %v1417 = vadd.f32 0.0, %v1416
      %v1418 = vpop.f32.mrf.mxu0
      %1419 = vmatprep.mubr.bf16.mxu0 0
      %1420 = vmatmul.mubr.bf16.gmra.mxu0 %v1264
      %v1421 = vpop.f32.mrf.mxu0
      %v1422 = vadd.f32 0.0, %v1421
      %v1423 = vpop.f32.mrf.mxu0
      %v1424 = vpop.f32.mrf.mxu0
      %v1425 = vadd.f32 0.0, %v1424
      %v1426 = vpop.f32.mrf.mxu0
      %1427 = vmatprep.mubr.bf16.mxu0 0
      %1428 = vmatmul.mubr.bf16.gmra.mxu0 %v1267
      %v1429 = vpop.f32.mrf.mxu0
      %v1430 = vadd.f32 0.0, %v1429
      %v1431 = vpop.f32.mrf.mxu0
      %v1432 = vpop.f32.mrf.mxu0
      %v1433 = vadd.f32 0.0, %v1432
      %v1434 = vpop.f32.mrf.mxu0
      %1435 = vmatprep.mubr.bf16.mxu0 0
      %1436 = vmatmul.mubr.bf16.gmra.mxu0 %v1270
      %v1437 = vpop.f32.mrf.mxu0
      %v1438 = vadd.f32 0.0, %v1437
      %v1439 = vpop.f32.mrf.mxu0
      %v1440 = vpop.f32.mrf.mxu0
      %v1441 = vadd.f32 0.0, %v1440
      %v1442 = vpop.f32.mrf.mxu0
      %1443 = vmatprep.mubr.bf16.mxu0 0
      %1444 = vmatmul.mubr.bf16.gmra.mxu0 %v1273
      %v1445 = vpop.f32.mrf.mxu0
      %v1446 = vadd.f32 0.0, %v1445
      %v1447 = vpop.f32.mrf.mxu0
      %v1448 = vpop.f32.mrf.mxu0
      %v1449 = vadd.f32 0.0, %v1448
      %v1450 = vpop.f32.mrf.mxu0
      %1451 = vmatprep.mubr.bf16.mxu0 0
      %1452 = vmatmul.mubr.bf16.gmra.mxu0 %v1276
      %v1453 = vpop.f32.mrf.mxu0
      %v1454 = vadd.f32 0.0, %v1453
      %v1455 = vpop.f32.mrf.mxu0
      %v1456 = vpop.f32.mrf.mxu0
      %v1457 = vadd.f32 0.0, %v1456
      %v1458 = vpop.f32.mrf.mxu0
      %1459 = vmatprep.mubr.bf16.mxu0 0
      %1460 = vmatmul.mubr.bf16.gmra.mxu0 %v1279
      %v1461 = vpop.f32.mrf.mxu0
      %v1462 = vadd.f32 0.0, %v1461
      %v1463 = vpop.f32.mrf.mxu0
      %v1464 = vpop.f32.mrf.mxu0
      %v1465 = vadd.f32 0.0, %v1464
      %v1466 = vpop.f32.mrf.mxu0
      %1467 = vmatprep.mubr.bf16.mxu0 0
      %1468 = vmatmul.mubr.bf16.gmra.mxu0 %v1282
      %v1469 = vpop.f32.mrf.mxu0
      %v1470 = vadd.f32 0.0, %v1469
      %v1471 = vpop.f32.mrf.mxu0
      %v1472 = vpop.f32.mrf.mxu0
      %v1473 = vpop.f32.mrf.mxu0
      %1474 = vdwg.mxu0
      %vm1475 = vcmp.gt.f32.partialorder %v1326, 0.0
      %vm1476 = vcmp.gt.f32.partialorder %v1329, 0.0
      %vm1477 = vcmp.gt.f32.partialorder %v1334, 0.0
      %vm1478 = vcmp.gt.f32.partialorder %v1337, 0.0
      %vm1479 = vcmp.gt.f32.partialorder %v1342, 0.0
      %vm1480 = vcmp.gt.f32.partialorder %v1345, 0.0
      %vm1481 = vcmp.gt.f32.partialorder %v1350, 0.0
      %vm1482 = vcmp.gt.f32.partialorder %v1353, 0.0
      %vm1483 = vcmp.gt.f32.partialorder %v1358, 0.0
      %vm1484 = vcmp.gt.f32.partialorder %v1361, 0.0
      %vm1485 = vcmp.gt.f32.partialorder %v1366, 0.0
      %vm1486 = vcmp.gt.f32.partialorder %v1369, 0.0
      %vm1487 = vcmp.gt.f32.partialorder %v1374, 0.0
      %vm1488 = vcmp.gt.f32.partialorder %v1377, 0.0
      %vm1489 = vcmp.gt.f32.partialorder %v1382, 0.0
      %vm1490 = vcmp.gt.f32.partialorder %v1385, 0.0
      %vm1491 = vcmp.gt.f32.partialorder %v1390, 0.0
      %vm1492 = vcmp.gt.f32.partialorder %v1393, 0.0
      %vm1493 = vcmp.gt.f32.partialorder %v1398, 0.0
      %vm1494 = vcmp.gt.f32.partialorder %v1401, 0.0
      %vm1495 = vcmp.gt.f32.partialorder %v1406, 0.0
      %vm1496 = vcmp.gt.f32.partialorder %v1409, 0.0
      %vm1497 = vcmp.gt.f32.partialorder %v1414, 0.0
      %vm1498 = vcmp.gt.f32.partialorder %v1417, 0.0
      %vm1499 = vcmp.gt.f32.partialorder %v1422, 0.0
      %vm1500 = vcmp.gt.f32.partialorder %v1425, 0.0
      %vm1501 = vcmp.gt.f32.partialorder %v1430, 0.0
      %vm1502 = vcmp.gt.f32.partialorder %v1433, 0.0
      %vm1503 = vcmp.gt.f32.partialorder %v1438, 0.0
      %vm1504 = vcmp.gt.f32.partialorder %v1441, 0.0
      %vm1505 = vcmp.gt.f32.partialorder %v1446, 0.0
      %vm1506 = vcmp.gt.f32.partialorder %v1449, 0.0
      %vm1507 = vcmp.gt.f32.partialorder %v1454, 0.0
      %vm1508 = vcmp.gt.f32.partialorder %v1457, 0.0
      %vm1509 = vcmp.gt.f32.partialorder %v1462, 0.0
      %vm1510 = vcmp.gt.f32.partialorder %v1465, 0.0
      %vm1511 = vcmp.gt.f32.partialorder %v1470, 0.0
      %v1512 = vmul.f32 %v1326, 0.2
      %v1513 = vmul.f32 %v1329, 0.2
      %v1514 = vmul.f32 %v1334, 0.2
      %v1515 = vmul.f32 %v1337, 0.2
      %v1516 = vmul.f32 %v1342, 0.2
      %v1517 = vmul.f32 %v1345, 0.2
      %v1518 = vmul.f32 %v1350, 0.2
      %v1519 = vmul.f32 %v1353, 0.2
      %v1520 = vmul.f32 %v1358, 0.2
      %v1521 = vmul.f32 %v1361, 0.2
      %v1522 = vmul.f32 %v1366, 0.2
      %v1523 = vmul.f32 %v1369, 0.2
      %v1524 = vmul.f32 %v1374, 0.2
      %v1525 = vmul.f32 %v1377, 0.2
      %v1526 = vmul.f32 %v1382, 0.2
      %v1527 = vmul.f32 %v1385, 0.2
      %v1528 = vmul.f32 %v1390, 0.2
      %v1529 = vmul.f32 %v1393, 0.2
      %v1530 = vmul.f32 %v1398, 0.2
      %v1531 = vmul.f32 %v1401, 0.2
      %v1532 = vmul.f32 %v1406, 0.2
      %v1533 = vmul.f32 %v1409, 0.2
      %v1534 = vmul.f32 %v1414, 0.2
      %v1535 = vmul.f32 %v1417, 0.2
      %v1536 = vmul.f32 %v1422, 0.2
      %v1537 = vmul.f32 %v1425, 0.2
      %v1538 = vmul.f32 %v1430, 0.2
      %v1539 = vmul.f32 %v1433, 0.2
      %v1540 = vmul.f32 %v1438, 0.2
      %v1541 = vmul.f32 %v1441, 0.2
      %v1542 = vmul.f32 %v1446, 0.2
      %v1543 = vmul.f32 %v1449, 0.2
      %v1544 = vmul.f32 %v1454, 0.2
      %v1545 = vmul.f32 %v1457, 0.2
      %v1546 = vmul.f32 %v1462, 0.2
      %v1547 = vmul.f32 %v1465, 0.2
      %v1548 = vmul.f32 %v1470, 0.2
      %v1549 = vsel %vm1475, %v1326, %v1512
      %v1550 = vsel %vm1476, %v1329, %v1513
      %v1551 = vsel %vm1477, %v1334, %v1514
      %v1552 = vsel %vm1478, %v1337, %v1515
      %v1553 = vsel %vm1479, %v1342, %v1516
      %v1554 = vsel %vm1480, %v1345, %v1517
      %v1555 = vsel %vm1481, %v1350, %v1518
      %v1556 = vsel %vm1482, %v1353, %v1519
      %v1557 = vsel %vm1483, %v1358, %v1520
      %v1558 = vsel %vm1484, %v1361, %v1521
      %v1559 = vsel %vm1485, %v1366, %v1522
      %v1560 = vsel %vm1486, %v1369, %v1523
      %v1561 = vsel %vm1487, %v1374, %v1524
      %v1562 = vsel %vm1488, %v1377, %v1525
      %v1563 = vsel %vm1489, %v1382, %v1526
      %v1564 = vsel %vm1490, %v1385, %v1527
      %v1565 = vsel %vm1491, %v1390, %v1528
      %v1566 = vsel %vm1492, %v1393, %v1529
      %v1567 = vsel %vm1493, %v1398, %v1530
      %v1568 = vsel %vm1494, %v1401, %v1531
      %v1569 = vsel %vm1495, %v1406, %v1532
      %v1570 = vsel %vm1496, %v1409, %v1533
      %v1571 = vsel %vm1497, %v1414, %v1534
      %v1572 = vsel %vm1498, %v1417, %v1535
      %v1573 = vsel %vm1499, %v1422, %v1536
      %v1574 = vsel %vm1500, %v1425, %v1537
      %v1575 = vsel %vm1501, %v1430, %v1538
      %v1576 = vsel %vm1502, %v1433, %v1539
      %v1577 = vsel %vm1503, %v1438, %v1540
      %v1578 = vsel %vm1504, %v1441, %v1541
      %v1579 = vsel %vm1505, %v1446, %v1542
      %v1580 = vsel %vm1506, %v1449, %v1543
      %v1581 = vsel %vm1507, %v1454, %v1544
      %v1582 = vsel %vm1508, %v1457, %v1545
      %v1583 = vsel %vm1509, %v1462, %v1546
      %v1584 = vsel %vm1510, %v1465, %v1547
      %v1585 = vsel %vm1511, %v1470, %v1548
      %v1586 = vpack.c.bf16 %v1550, %v1549
      %v1587 = vpack.c.bf16 %v1552, %v1551
      %v1588 = vpack.c.bf16 %v1554, %v1553
      %v1589 = vpack.c.bf16 %v1556, %v1555
      %v1590 = vpack.c.bf16 %v1558, %v1557
      %v1591 = vpack.c.bf16 %v1560, %v1559
      %v1592 = vpack.c.bf16 %v1562, %v1561
      %v1593 = vpack.c.bf16 %v1564, %v1563
      %v1594 = vpack.c.bf16 %v1566, %v1565
      %v1595 = vpack.c.bf16 %v1568, %v1567
      %v1596 = vpack.c.bf16 %v1570, %v1569
      %v1597 = vpack.c.bf16 %v1572, %v1571
      %v1598 = vpack.c.bf16 %v1574, %v1573
      %v1599 = vpack.c.bf16 %v1576, %v1575
      %v1600 = vpack.c.bf16 %v1578, %v1577
      %v1601 = vpack.c.bf16 %v1580, %v1579
      %v1602 = vpack.c.bf16 %v1582, %v1581
      %v1603 = vpack.c.bf16 %v1584, %v1583
      %v1604 = vpack.c.bf16 %v1585, %v1585
      %v1624 = vunpack.c.l.b16 %v1586
      %v1625 = vunpack.c.h.b16 %v1586
      %v1626 = vunpack.c.l.b16 %v1587
      %v1627 = vunpack.c.h.b16 %v1587
      %v1628 = vunpack.c.l.b16 %v1588
      %v1629 = vunpack.c.h.b16 %v1588
      %v1630 = vunpack.c.l.b16 %v1589
      %v1631 = vunpack.c.h.b16 %v1589
      %v1632 = vunpack.c.l.b16 %v1590
      %v1633 = vunpack.c.h.b16 %v1590
      %v1634 = vunpack.c.l.b16 %v1591
      %v1635 = vunpack.c.h.b16 %v1591
      %v1636 = vunpack.c.l.b16 %v1592
      %v1637 = vunpack.c.h.b16 %v1592
      %v1638 = vunpack.c.l.b16 %v1593
      %v1639 = vunpack.c.h.b16 %v1593
      %v1640 = vunpack.c.l.b16 %v1594
      %v1641 = vunpack.c.h.b16 %v1594
      %v1642 = vunpack.c.l.b16 %v1595
      %v1643 = vunpack.c.h.b16 %v1595
      %v1644 = vunpack.c.l.b16 %v1596
      %v1645 = vunpack.c.h.b16 %v1596
      %v1646 = vunpack.c.l.b16 %v1597
      %v1647 = vunpack.c.h.b16 %v1597
      %v1648 = vunpack.c.l.b16 %v1598
      %v1649 = vunpack.c.h.b16 %v1598
      %v1650 = vunpack.c.l.b16 %v1599
      %v1651 = vunpack.c.h.b16 %v1599
      %v1652 = vunpack.c.l.b16 %v1600
      %v1653 = vunpack.c.h.b16 %v1600
      %v1654 = vunpack.c.l.b16 %v1601
      %v1655 = vunpack.c.h.b16 %v1601
      %v1656 = vunpack.c.l.b16 %v1602
      %v1657 = vunpack.c.h.b16 %v1602
      %v1658 = vunpack.c.l.b16 %v1603
      %v1659 = vunpack.c.h.b16 %v1603
      %v1660 = vunpack.c.l.b16 %v1604
      %v1661 = vpack.c.b16 %v1624, %v1624
      %v1662 = vpack.c.b16 %v1625, %v1625
      %v1663 = vpack.c.b16 %v1626, %v1626
      %v1664 = vpack.c.b16 %v1627, %v1627
      %v1665 = vpack.c.b16 %v1628, %v1628
      %v1666 = vpack.c.b16 %v1629, %v1629
      %v1667 = vpack.c.b16 %v1630, %v1630
      %v1668 = vpack.c.b16 %v1631, %v1631
      %v1669 = vpack.c.b16 %v1632, %v1632
      %v1670 = vpack.c.b16 %v1633, %v1633
      %v1671 = vpack.c.b16 %v1634, %v1634
      %v1672 = vpack.c.b16 %v1635, %v1635
      %v1673 = vpack.c.b16 %v1636, %v1636
      %v1674 = vpack.c.b16 %v1637, %v1637
      %v1675 = vpack.c.b16 %v1638, %v1638
      %v1676 = vpack.c.b16 %v1639, %v1639
      %v1677 = vpack.c.b16 %v1640, %v1640
      %v1678 = vpack.c.b16 %v1641, %v1641
      %v1679 = vpack.c.b16 %v1642, %v1642
      %v1680 = vpack.c.b16 %v1643, %v1643
      %v1681 = vpack.c.b16 %v1644, %v1644
      %v1682 = vpack.c.b16 %v1645, %v1645
      %v1683 = vpack.c.b16 %v1646, %v1646
      %v1684 = vpack.c.b16 %v1647, %v1647
      %v1685 = vpack.c.b16 %v1648, %v1648
      %v1686 = vpack.c.b16 %v1649, %v1649
      %v1687 = vpack.c.b16 %v1650, %v1650
      %v1688 = vpack.c.b16 %v1651, %v1651
      %v1689 = vpack.c.b16 %v1652, %v1652
      %v1690 = vpack.c.b16 %v1653, %v1653
      %v1691 = vpack.c.b16 %v1654, %v1654
      %v1692 = vpack.c.b16 %v1655, %v1655
      %v1693 = vpack.c.b16 %v1656, %v1656
      %v1694 = vpack.c.b16 %v1657, %v1657
      %v1695 = vpack.c.b16 %v1658, %v1658
      %v1696 = vpack.c.b16 %v1659, %v1659
      %v1697 = vpack.c.b16 %v1660, %v1660
      %1735 = vst [vmem:[%s143] sm:$0xf] %v1661
      %1736 = vst [vmem:[%s143 + $0x4] sm:$0xf] %v1662
      %1737 = vst [vmem:[%s143 + $0x8] sm:$0xf] %v1663
      %1738 = vst [vmem:[%s143 + $0xc] sm:$0xf] %v1664
      %1739 = vst [vmem:[%s143 + $0x10] sm:$0xf] %v1665
      %1740 = vst [vmem:[%s143 + $0x14] sm:$0xf] %v1666
      %1741 = vst [vmem:[%s143 + $0x18] sm:$0xf] %v1667
      %1742 = vst [vmem:[%s143 + $0x1c] sm:$0xf] %v1668
      %1743 = vst [vmem:[%s143 + $0x20] sm:$0xf] %v1669
      %1744 = vst [vmem:[%s143 + $0x24] sm:$0xf] %v1670
      %1745 = vst [vmem:[%s143 + $0x28] sm:$0xf] %v1671
      %1746 = vst [vmem:[%s143 + $0x2c] sm:$0xf] %v1672
      %1747 = vst [vmem:[%s143 + $0x30] sm:$0xf] %v1673
      %1748 = vst [vmem:[%s143 + $0x34] sm:$0xf] %v1674
      %1749 = vst [vmem:[%s143 + $0x38] sm:$0xf] %v1675
      %1750 = vst [vmem:[%s143 + $0x3c] sm:$0xf] %v1676
      %1751 = vst [vmem:[%s143 + $0x40] sm:$0xf] %v1677
      %1752 = vst [vmem:[%s143 + $0x44] sm:$0xf] %v1678
      %1753 = vst [vmem:[%s143 + $0x48] sm:$0xf] %v1679
      %1754 = vst [vmem:[%s143 + $0x4c] sm:$0xf] %v1680
      %1755 = vst [vmem:[%s143 + $0x50] sm:$0xf] %v1681
      %1756 = vst [vmem:[%s143 + $0x54] sm:$0xf] %v1682
      %1757 = vst [vmem:[%s143 + $0x58] sm:$0xf] %v1683
      %1758 = vst [vmem:[%s143 + $0x5c] sm:$0xf] %v1684
      %1759 = vst [vmem:[%s143 + $0x60] sm:$0xf] %v1685
      %1760 = vst [vmem:[%s143 + $0x64] sm:$0xf] %v1686
      %1761 = vst [vmem:[%s143 + $0x68] sm:$0xf] %v1687
      %1762 = vst [vmem:[%s143 + $0x6c] sm:$0xf] %v1688
      %1763 = vst [vmem:[%s143 + $0x70] sm:$0xf] %v1689
      %1764 = vst [vmem:[%s143 + $0x74] sm:$0xf] %v1690
      %1765 = vst [vmem:[%s143 + $0x78] sm:$0xf] %v1691
      %1766 = vst [vmem:[%s143 + $0x7c] sm:$0xf] %v1692
      %1767 = vst [vmem:[%s143 + $0x80] sm:$0xf] %v1693
      %1768 = vst [vmem:[%s143 + $0x84] sm:$0xf] %v1694
      %1769 = vst [vmem:[%s143 + $0x88] sm:$0xf] %v1695
      %1770 = vst [vmem:[%s143 + $0x8c] sm:$0xf] %v1696
      %1771 = vst [vmem:[%s143 + $0x90] sm:$0xf] %v1697
      %p1772 = scmp.lt.s32.totalorder %s13, 1
      %s1773 = scalar_select %p1772, %s13, 1
      %s1774 = smul.addr %s1773, 37
      %s1775 = smul.addr %s1774, 4
      %s1776 = scalar_lea.vmem %s2, %s1775
      // Predicated region
      $region29: #{wgan_gp_discriminator_forward.3} parent=27 // pred_check
        %p1777 = pneg %p78
      $region30: #{wgan_gp_discriminator_forward.3} parent=27 // pred_check_branch
        %1779 = sbr.rel (%p1777) target = $region32
      $region31: #{wgan_gp_discriminator_forward.3} parent=27 // pred_region
        _
      $region32: #{wgan_gp_discriminator_forward.3} parent=27 // pred_fallthru
        _
    $region28: #{wgan_gp_discriminator_forward.3} parent=5 // pred_fallthru
      _
    %p1780 = scmp.le.s32.totalorder 2, %s8
    // Predicated region
    $region33: #{wgan_gp_discriminator_forward.3} parent=5 // pred_check
      %p1781 = pneg %p1780
    $region34: #{wgan_gp_discriminator_forward.3} parent=5 // pred_check_branch
      %1783 = sbr.rel (%p1781) target = $region36
    $region35: #{wgan_gp_discriminator_forward.3} parent=5 // pred_region
      %s1784 = ssub.s32 %s8, 2
      // Predicated region
      $region37: #{wgan_gp_discriminator_forward.3} parent=35 // pred_check
        %p1785 = pneg %p84
      $region38: #{wgan_gp_discriminator_forward.3} parent=35 // pred_check_branch
        %1787 = sbr.rel (%p1785) target = $region40
      $region39: #{wgan_gp_discriminator_forward.3} parent=35 // pred_region
        %p1788 = scmp.lt.s32.totalorder %s14, 1
        %s1789 = scalar_select %p1788, %s14, 1
        %s1790 = smul.addr %s1789, 37
        %s1791 = smul.addr %s1790, 4
        %s1792 = scalar_lea.vmem %s2, %s1791
      $region40: #{wgan_gp_discriminator_forward.3} parent=35 // pred_fallthru
        _
    $region36: #{wgan_gp_discriminator_forward.3} parent=5 // pred_fallthru
      _
  $region6: #{wgan_gp_discriminator_forward.3} parent=0 // loop_footer
    %s12 = sadd.s32 1, %s8
  $region7: #{wgan_gp_discriminator_forward.3} parent=0 // loop_footer_branch
    %7 = sbr.rel target = $region3
  $region8: #{wgan_gp_discriminator_forward.3} parent=0 // loop_exit
    _

// kernel: wgan_gp_discriminator_forward.4
$region0: #{wgan_gp_discriminator_forward.4}
  #allocation0 [shape = 'u32[]', space=smem, size = 0x4, offset = 0x4, fixed_abs, tag = 'smem constant byte address 0x4 - core index']
  #allocation1 [shape = 'u32[144,128]{1,0:T(1,128)}', space=vmem, size = 0x12000, scoped, tag = 'internal scratch']
  %s0 = inlined_call_operand.vmem [shape: f32[2,104,32], index: 0, kind: input, shape index: {}]
  %s1 = inlined_call_operand.vmem [shape: bf16[72,128], index: 1, kind: input, shape index: {}]
  %s2 = inlined_call_operand.vmem [shape: bf16[2,88,128], index: 2, kind: output, shape index: {}]
  %s3 = sld [smem:[#allocation0]]
  $region41: #{wgan_gp_discriminator_forward.4} parent=0
    _
  %s5 = ssub.s32 1, %s3
  %s6 = scalar_select 0, %s5, %s3
  loop: start=0, step=1, limit=4
  $region2: #{wgan_gp_discriminator_forward.4} parent=0 // loop_pre_header
    _
  $region3: #{wgan_gp_discriminator_forward.4} parent=0 // loop_header
    %s8 = sphi 0, %s12
    %p9 = scmp.ge.s32.totalorder %s8, 4
    %s18 = sphi 0, %s20
    %s21 = sphi 0, %s18
    %s22 = sphi 0, %s21
    %s38 = sphi 0, %s22
    %s42 = sphi 0, %s42
    %s44 = sphi 0, %s42
    %s45 = sphi 0, %s44
    %s59 = sphi 0, %s45
    %s65 = sphi 0, %s67
    %s68 = sphi 0, %s65
    %s69 = sphi 0, %s68
    %s85 = sphi 0, %s69
  $region4: #{wgan_gp_discriminator_forward.4} parent=0 // loop_header_branch
    %11 = sbr.rel (%p9) target = $region8
  $region5: #{wgan_gp_discriminator_forward.4} parent=0 // loop_body
    %s13 = ssub.s32 %s8, 1
    %s14 = ssub.s32 %s8, 2
    %s15 = sadd.s32 %s8, 1
    %s16 = ssub.s32 %s8, %s15
    %p17 = scmp.eq.s32.totalorder %s16, 0
    %s19 = sadd.s32 %s18, 1
    %s20 = scalar_select %p17, %s18, %s19
    %p23 = pneg %p17
    %p24 = scmp.eq.s32.totalorder %s8, 1
    %p25 = por %p23, %p24
    %p26 = scmp.ne.s32.totalorder %s18, %s21
    %p27 = scmp.eq.s32.totalorder %s8, 0
    %p28 = por %p26, %p27
    %p29 = scmp.ne.s32.totalorder %s18, %s21
    %p30 = scmp.eq.s32.totalorder %s13, 1
    %p31 = por %p29, %p30
    %p32 = scmp.ne.s32.totalorder %s21, %s22
    %p33 = scmp.eq.s32.totalorder %s13, 0
    %p34 = por %p32, %p33
    %p35 = scmp.ne.s32.totalorder %s21, %s22
    %p36 = scmp.eq.s32.totalorder %s14, 1
    %p37 = por %p35, %p36
    %p39 = scmp.ne.s32.totalorder %s22, %s38
    %p40 = scmp.eq.s32.totalorder %s14, 0
    %p41 = por %p39, %p40
    %s43 = sadd.s32 %s42, 1
    %p46 = scmp.eq.s32.totalorder %s8, 1
    %p47 = scmp.ne.s32.totalorder %s42, %s44
    %p48 = scmp.eq.s32.totalorder %s8, 0
    %p49 = por %p47, %p48
    %p50 = scmp.ne.s32.totalorder %s42, %s44
    %p51 = scmp.eq.s32.totalorder %s13, 1
    %p52 = por %p50, %p51
    %p53 = scmp.ne.s32.totalorder %s44, %s45
    %p54 = scmp.eq.s32.totalorder %s13, 0
    %p55 = por %p53, %p54
    %p56 = scmp.ne.s32.totalorder %s44, %s45
    %p57 = scmp.eq.s32.totalorder %s14, 1
    %p58 = por %p56, %p57
    %p60 = scmp.ne.s32.totalorder %s45, %s59
    %p61 = scmp.eq.s32.totalorder %s14, 0
    %p62 = por %p60, %p61
    %s63 = ssub.s32 %s8, %s15
    %p64 = scmp.eq.s32.totalorder %s63, 0
    %s66 = sadd.s32 %s65, 1
    %s67 = scalar_select %p64, %s65, %s66
    %p70 = pneg %p64
    %p71 = scmp.eq.s32.totalorder %s8, 1
    %p72 = por %p70, %p71
    %p73 = scmp.ne.s32.totalorder %s65, %s68
    %p74 = scmp.eq.s32.totalorder %s8, 0
    %p75 = por %p73, %p74
    %p76 = scmp.ne.s32.totalorder %s65, %s68
    %p77 = scmp.eq.s32.totalorder %s13, 1
    %p78 = por %p76, %p77
    %p79 = scmp.ne.s32.totalorder %s68, %s69
    %p80 = scmp.eq.s32.totalorder %s13, 0
    %p81 = por %p79, %p80
    %p82 = scmp.ne.s32.totalorder %s68, %s69
    %p83 = scmp.eq.s32.totalorder %s14, 1
    %p84 = por %p82, %p83
    %p86 = scmp.ne.s32.totalorder %s69, %s85
    %p87 = scmp.eq.s32.totalorder %s14, 0
    %p88 = por %p86, %p87
    %p89 = scmp.le.s32.totalorder 1, %s8
    %p90 = scmp.lt.s32.totalorder %s8, 3
    %p91 = pnand %p89, %p90
    %p92 = pneg %p91
    // Predicated region
    $region9: #{wgan_gp_discriminator_forward.4} parent=5 // pred_check
      _
    $region10: #{wgan_gp_discriminator_forward.4} parent=5 // pred_check_branch
      %94 = sbr.rel (%p91) target = $region12
    $region11: #{wgan_gp_discriminator_forward.4} parent=5 // pred_region
      %s95 = ssub.s32 %s8, 1
      // Predicated region
      $region13: #{wgan_gp_discriminator_forward.4} parent=11 // pred_check
        %p96 = pneg %p55
      $region14: #{wgan_gp_discriminator_forward.4} parent=11 // pred_check_branch
        %98 = sbr.rel (%p96) target = $region16
      $region15: #{wgan_gp_discriminator_forward.4} parent=11 // pred_region
        _
      $region16: #{wgan_gp_discriminator_forward.4} parent=11 // pred_fallthru
        _
    $region12: #{wgan_gp_discriminator_forward.4} parent=5 // pred_fallthru
      _
    %p99 = scmp.lt.s32.totalorder %s8, 2
    // Predicated region
    $region17: #{wgan_gp_discriminator_forward.4} parent=5 // pred_check
      %p100 = pneg %p99
    $region18: #{wgan_gp_discriminator_forward.4} parent=5 // pred_check_branch
      %102 = sbr.rel (%p100) target = $region20
    $region19: #{wgan_gp_discriminator_forward.4} parent=5 // pred_region
      // Predicated region
      $region21: #{wgan_gp_discriminator_forward.4} parent=19 // pred_check
        %p103 = pneg %p28
      $region22: #{wgan_gp_discriminator_forward.4} parent=19 // pred_check_branch
        %105 = sbr.rel (%p103) target = $region24
      $region23: #{wgan_gp_discriminator_forward.4} parent=19 // pred_region
        %p106 = scmp.lt.s32.totalorder %s8, 1
        %s107 = scalar_select %p106, %s8, 1
        %s108 = smul.addr %s107, 13
        %s109 = smul.addr %s108, 8
        %s110 = scalar_lea.vmem %s0, %s109
      $region24: #{wgan_gp_discriminator_forward.4} parent=19 // pred_fallthru
        _
    $region20: #{wgan_gp_discriminator_forward.4} parent=5 // pred_fallthru
      _
    %p111 = scmp.le.s32.totalorder 1, %s8
    %p112 = scmp.lt.s32.totalorder %s8, 3
    %p113 = pnand %p111, %p112
    %p114 = pneg %p113
    // Predicated region
    $region25: #{wgan_gp_discriminator_forward.4} parent=5 // pred_check
      _
    $region26: #{wgan_gp_discriminator_forward.4} parent=5 // pred_check_branch
      %116 = sbr.rel (%p113) target = $region28
    $region27: #{wgan_gp_discriminator_forward.4} parent=5 // pred_region
      %s117 = ssub.s32 %s8, 1
      %p118 = scmp.lt.s32.totalorder %s13, 1
      %s119 = scalar_select %p118, %s13, 1
      %s120 = smul.addr %s119, 13
      %s121 = smul.addr %s120, 8
      %s122 = scalar_lea.vmem %s0, %s121
      %p123 = pneg %p34
      %p124 = pneg %p31
      %p125 = pneg %p55
      %p126 = pneg %p52
      %p127 = pneg %p81
      %p128 = pneg %p78
      %p129 = scmp.lt.s32.totalorder %s13, 1
      %s130 = scalar_select %p129, %s13, 1
      %s131 = smul.addr %s130, 11
      %s132 = smul.addr %s131, 4
      %s133 = scalar_lea.vmem %s2, %s132
      %p134 = scmp.lt.s32.totalorder %s13, 1
      %s135 = scalar_select %p134, %s13, 1
      %s136 = smul.addr %s135, 13
      %s137 = smul.addr %s136, 8
      %s138 = scalar_lea.vmem %s0, %s137
      %p139 = scmp.lt.s32.totalorder %s13, 1
      %s140 = scalar_select %p139, %s13, 1
      %s141 = smul.addr %s140, 11
      %s142 = smul.addr %s141, 4
      %s143 = scalar_lea.vmem %s2, %s142
      %v145 = vld [vmem:[%s138] sm:$0xff]
      %v146 = vld [vmem:[%s138 + $0x8] sm:$0xff]
      %v147 = vld [vmem:[%s138 + $0x10] sm:$0xff]
      %v148 = vld [vmem:[%s138 + $0x18] sm:$0xff]
      %v149 = vld [vmem:[%s138 + $0x20] sm:$0xff]
      %v150 = vld [vmem:[%s138 + $0x28] sm:$0xff]
      %v151 = vld [vmem:[%s138 + $0x30] sm:$0xff]
      %v152 = vld [vmem:[%s138 + $0x38] sm:$0xff]
      %v153 = vld [vmem:[%s138 + $0x40] sm:$0xff]
      %v154 = vld [vmem:[%s138 + $0x48] sm:$0xff]
      %v155 = vld [vmem:[%s138 + $0x50] sm:$0xff]
      %v156 = vld [vmem:[%s138 + $0x1] sm:$0xff]
      %v157 = vld [vmem:[%s138 + $0x9] sm:$0xff]
      %v158 = vld [vmem:[%s138 + $0x11] sm:$0xff]
      %v159 = vld [vmem:[%s138 + $0x19] sm:$0xff]
      %v160 = vld [vmem:[%s138 + $0x21] sm:$0xff]
      %v161 = vld [vmem:[%s138 + $0x29] sm:$0xff]
      %v162 = vld [vmem:[%s138 + $0x31] sm:$0xff]
      %v163 = vld [vmem:[%s138 + $0x39] sm:$0xff]
      %v164 = vld [vmem:[%s138 + $0x41] sm:$0xff]
      %v165 = vld [vmem:[%s138 + $0x49] sm:$0xff]
      %v166 = vld [vmem:[%s138 + $0x51] sm:$0xff]
      %v167 = vld [vmem:[%s138 + $0x59] sm:$0xff]
      %v168 = vld [vmem:[%s138 + $0xa] sm:$0xff]
      %v169 = vld [vmem:[%s138 + $0x12] sm:$0xff]
      %v170 = vld [vmem:[%s138 + $0x1a] sm:$0xff]
      %v171 = vld [vmem:[%s138 + $0x22] sm:$0xff]
      %v172 = vld [vmem:[%s138 + $0x2a] sm:$0xff]
      %v173 = vld [vmem:[%s138 + $0x32] sm:$0xff]
      %v174 = vld [vmem:[%s138 + $0x3a] sm:$0xff]
      %v175 = vld [vmem:[%s138 + $0x42] sm:$0xff]
      %v176 = vld [vmem:[%s138 + $0x4a] sm:$0xff]
      %v177 = vld [vmem:[%s138 + $0x52] sm:$0xff]
      %v178 = vld [vmem:[%s138 + $0x5a] sm:$0xff]
      %190 = vrot.lane.b32.xlu0 %v156, 16
      %v191 = vpop.permute.xlu0 %190
      %192 = vrot.lane.b32.xlu0 %v157, 16
      %v193 = vpop.permute.xlu0 %192
      %194 = vrot.lane.b32.xlu0 %v158, 16
      %v195 = vpop.permute.xlu0 %194
      %196 = vrot.lane.b32.xlu0 %v159, 16
      %v197 = vpop.permute.xlu0 %196
      %198 = vrot.lane.b32.xlu0 %v160, 16
      %v199 = vpop.permute.xlu0 %198
      %200 = vrot.lane.b32.xlu0 %v161, 16
      %v201 = vpop.permute.xlu0 %200
      %202 = vrot.lane.b32.xlu0 %v162, 16
      %v203 = vpop.permute.xlu0 %202
      %204 = vrot.lane.b32.xlu0 %v163, 16
      %v205 = vpop.permute.xlu0 %204
      %206 = vrot.lane.b32.xlu0 %v164, 16
      %v207 = vpop.permute.xlu0 %206
      %208 = vrot.lane.b32.xlu0 %v165, 16
      %v209 = vpop.permute.xlu0 %208
      %210 = vrot.lane.b32.xlu0 %v166, 16
      %v211 = vpop.permute.xlu0 %210
      %234 = vrot.lane.b32.xlu0 %v145, 8
      %v235 = vpop.permute.xlu0 %234
      %236 = vrot.lane.b32.xlu0 %v146, 8
      %v237 = vpop.permute.xlu0 %236
      %238 = vrot.lane.b32.xlu0 %v147, 8
      %v239 = vpop.permute.xlu0 %238
      %240 = vrot.lane.b32.xlu0 %v148, 8
      %v241 = vpop.permute.xlu0 %240
      %242 = vrot.lane.b32.xlu0 %v149, 8
      %v243 = vpop.permute.xlu0 %242
      %244 = vrot.lane.b32.xlu0 %v150, 8
      %v245 = vpop.permute.xlu0 %244
      %246 = vrot.lane.b32.xlu0 %v151, 8
      %v247 = vpop.permute.xlu0 %246
      %248 = vrot.lane.b32.xlu0 %v152, 8
      %v249 = vpop.permute.xlu0 %248
      %250 = vrot.lane.b32.xlu0 %v153, 8
      %v251 = vpop.permute.xlu0 %250
      %252 = vrot.lane.b32.xlu0 %v154, 8
      %v253 = vpop.permute.xlu0 %252
      %254 = vrot.lane.b32.xlu0 %v155, 8
      %v255 = vpop.permute.xlu0 %254
      %267 = vrot.lane.b32.xlu0 %v156, 24
      %v268 = vpop.permute.xlu0 %267
      %269 = vrot.lane.b32.xlu0 %v157, 24
      %v270 = vpop.permute.xlu0 %269
      %271 = vrot.lane.b32.xlu0 %v158, 24
      %v272 = vpop.permute.xlu0 %271
      %273 = vrot.lane.b32.xlu0 %v159, 24
      %v274 = vpop.permute.xlu0 %273
      %275 = vrot.lane.b32.xlu0 %v160, 24
      %v276 = vpop.permute.xlu0 %275
      %277 = vrot.lane.b32.xlu0 %v161, 24
      %v278 = vpop.permute.xlu0 %277
      %279 = vrot.lane.b32.xlu0 %v162, 24
      %v280 = vpop.permute.xlu0 %279
      %281 = vrot.lane.b32.xlu0 %v163, 24
      %v282 = vpop.permute.xlu0 %281
      %283 = vrot.lane.b32.xlu0 %v164, 24
      %v284 = vpop.permute.xlu0 %283
      %285 = vrot.lane.b32.xlu0 %v165, 24
      %v286 = vpop.permute.xlu0 %285
      %287 = vrot.lane.b32.xlu0 %v166, 24
      %v288 = vpop.permute.xlu0 %287
      %301 = vrot.lane.b32.xlu0 %v157, 48
      %v302 = vpop.permute.xlu0 %301
      %303 = vrot.lane.b32.xlu0 %v158, 48
      %v304 = vpop.permute.xlu0 %303
      %305 = vrot.lane.b32.xlu0 %v159, 48
      %v306 = vpop.permute.xlu0 %305
      %307 = vrot.lane.b32.xlu0 %v160, 48
      %v308 = vpop.permute.xlu0 %307
      %309 = vrot.lane.b32.xlu0 %v161, 48
      %v310 = vpop.permute.xlu0 %309
      %311 = vrot.lane.b32.xlu0 %v162, 48
      %v312 = vpop.permute.xlu0 %311
      %313 = vrot.lane.b32.xlu0 %v163, 48
      %v314 = vpop.permute.xlu0 %313
      %315 = vrot.lane.b32.xlu0 %v164, 48
      %v316 = vpop.permute.xlu0 %315
      %317 = vrot.lane.b32.xlu0 %v165, 48
      %v318 = vpop.permute.xlu0 %317
      %319 = vrot.lane.b32.xlu0 %v166, 48
      %v320 = vpop.permute.xlu0 %319
      %321 = vrot.lane.b32.xlu0 %v167, 48
      %v322 = vpop.permute.xlu0 %321
      %345 = vrot.lane.b32.xlu0 %v168, 64
      %v346 = vpop.permute.xlu0 %345
      %347 = vrot.lane.b32.xlu0 %v169, 64
      %v348 = vpop.permute.xlu0 %347
      %349 = vrot.lane.b32.xlu0 %v170, 64
      %v350 = vpop.permute.xlu0 %349
      %351 = vrot.lane.b32.xlu0 %v171, 64
      %v352 = vpop.permute.xlu0 %351
      %353 = vrot.lane.b32.xlu0 %v172, 64
      %v354 = vpop.permute.xlu0 %353
      %355 = vrot.lane.b32.xlu0 %v173, 64
      %v356 = vpop.permute.xlu0 %355
      %357 = vrot.lane.b32.xlu0 %v174, 64
      %v358 = vpop.permute.xlu0 %357
      %359 = vrot.lane.b32.xlu0 %v175, 64
      %v360 = vpop.permute.xlu0 %359
      %361 = vrot.lane.b32.xlu0 %v176, 64
      %v362 = vpop.permute.xlu0 %361
      %363 = vrot.lane.b32.xlu0 %v177, 64
      %v364 = vpop.permute.xlu0 %363
      %365 = vrot.lane.b32.xlu0 %v178, 64
      %v366 = vpop.permute.xlu0 %365
      %vm378 = vcmask 130048
      %v379 = vsel %vm378, %v145, %v191
      %v380 = vsel %vm378, %v146, %v193
      %v381 = vsel %vm378, %v147, %v195
      %v382 = vsel %vm378, %v148, %v197
      %v383 = vsel %vm378, %v149, %v199
      %v384 = vsel %vm378, %v150, %v201
      %v385 = vsel %vm378, %v151, %v203
      %v386 = vsel %vm378, %v152, %v205
      %v387 = vsel %vm378, %v153, %v207
      %v388 = vsel %vm378, %v154, %v209
      %v389 = vsel %vm378, %v155, %v211
      %vm390 = vcmask 195584
      %v391 = vsel %vm390, %v379, %v235
      %v392 = vsel %vm390, %v380, %v237
      %v393 = vsel %vm390, %v381, %v239
      %v394 = vsel %vm390, %v382, %v241
      %v395 = vsel %vm390, %v383, %v243
      %v396 = vsel %vm390, %v384, %v245
      %v397 = vsel %vm390, %v385, %v247
      %v398 = vsel %vm390, %v386, %v249
      %v399 = vsel %vm390, %v387, %v251
      %v400 = vsel %vm390, %v388, %v253
      %v401 = vsel %vm390, %v389, %v255
      %vm402 = vcmask 261120
      %v403 = vsel %vm402, %v391, %v235
      %v404 = vsel %vm402, %v392, %v237
      %v405 = vsel %vm402, %v393, %v239
      %v406 = vsel %vm402, %v394, %v241
      %v407 = vsel %vm402, %v395, %v243
      %v408 = vsel %vm402, %v396, %v245
      %v409 = vsel %vm402, %v397, %v247
      %v410 = vsel %vm402, %v398, %v249
      %v411 = vsel %vm402, %v399, %v251
      %v412 = vsel %vm402, %v400, %v253
      %v413 = vsel %vm402, %v401, %v255
      %vm414 = vcmask 326656
      %v415 = vsel %vm414, %v403, %v268
      %v416 = vsel %vm414, %v404, %v270
      %v417 = vsel %vm414, %v405, %v272
      %v418 = vsel %vm414, %v406, %v274
      %v419 = vsel %vm414, %v407, %v276
      %v420 = vsel %vm414, %v408, %v278
      %v421 = vsel %vm414, %v409, %v280
      %v422 = vsel %vm414, %v410, %v282
      %v423 = vsel %vm414, %v411, %v284
      %v424 = vsel %vm414, %v412, %v286
      %v425 = vsel %vm414, %v413, %v288
      %vm426 = vcmask 392192
      %v427 = vsel %vm426, %v415, %v302
      %v428 = vsel %vm426, %v416, %v304
      %v429 = vsel %vm426, %v417, %v306
      %v430 = vsel %vm426, %v418, %v308
      %v431 = vsel %vm426, %v419, %v310
      %v432 = vsel %vm426, %v420, %v312
      %v433 = vsel %vm426, %v421, %v314
      %v434 = vsel %vm426, %v422, %v316
      %v435 = vsel %vm426, %v423, %v318
      %v436 = vsel %vm426, %v424, %v320
      %v437 = vsel %vm426, %v425, %v322
      %vm438 = vcmask 457728
      %v439 = vsel %vm438, %v427, %v302
      %v440 = vsel %vm438, %v428, %v304
      %v441 = vsel %vm438, %v429, %v306
      %v442 = vsel %vm438, %v430, %v308
      %v443 = vsel %vm438, %v431, %v310
      %v444 = vsel %vm438, %v432, %v312
      %v445 = vsel %vm438, %v433, %v314
      %v446 = vsel %vm438, %v434, %v316
      %v447 = vsel %vm438, %v435, %v318
      %v448 = vsel %vm438, %v436, %v320
      %v449 = vsel %vm438, %v437, %v322
      %vm450 = vcmask 523264
      %v451 = vsel %vm450, %v439, %v346
      %v452 = vsel %vm450, %v440, %v348
      %v453 = vsel %vm450, %v441, %v350
      %v454 = vsel %vm450, %v442, %v352
      %v455 = vsel %vm450, %v443, %v354
      %v456 = vsel %vm450, %v444, %v356
      %v457 = vsel %vm450, %v445, %v358
      %v458 = vsel %vm450, %v446, %v360
      %v459 = vsel %vm450, %v447, %v362
      %v460 = vsel %vm450, %v448, %v364
      %v461 = vsel %vm450, %v449, %v366
      %v462 = vpack.c.bf16 %v452, %v451
      %v463 = vpack.c.bf16 %v454, %v453
      %v464 = vpack.c.bf16 %v456, %v455
      %v465 = vpack.c.bf16 %v458, %v457
      %v466 = vpack.c.bf16 %v460, %v459
      %v467 = vpack.c.bf16 %v461, %v461
      %v468 = vld [vmem:[%s1] sm:$0xf]
      %v469 = vld [vmem:[%s1 + $0x4] sm:$0xf]
      %v470 = vld [vmem:[%s1 + $0x8] sm:$0xf]
      %v471 = vld [vmem:[%s1 + $0xc] sm:$0xf]
      %v472 = vld [vmem:[%s1 + $0x10] sm:$0xf]
      %v473 = vld [vmem:[%s1 + $0x14] sm:$0xf]
      %v474 = vld [vmem:[%s1 + $0x18] sm:$0xf]
      %v475 = vld [vmem:[%s1 + $0x1c] sm:$0xf]
      %v476 = vld [vmem:[%s1 + $0x20] sm:$0xf]
      %v486 = vunpack.c.l.b16 %v468
      %v487 = vunpack.c.l.b16 %v469
      %v488 = vunpack.c.l.b16 %v470
      %v489 = vunpack.c.l.b16 %v471
      %v490 = vunpack.c.l.b16 %v472
      %v491 = vunpack.c.l.b16 %v473
      %v492 = vunpack.c.l.b16 %v474
      %v493 = vunpack.c.l.b16 %v475
      %v494 = vunpack.c.l.b16 %v476
      %v495 = vpack.c.b16 %v487, %v486
      %v496 = vpack.c.b16 %v489, %v488
      %v497 = vpack.c.b16 %v491, %v490
      %v498 = vpack.c.b16 %v493, %v492
      %v499 = vpack.c.b16 %v494, %v494
      %vm504 = vcmask 588800
      %v506 = vsel %vm504, %v462, 0
      %v509 = vsel %vm504, %v463, 0
      %v512 = vsel %vm504, %v464, 0
      %v515 = vsel %vm504, %v465, 0
      %v518 = vsel %vm504, %v466, 0
      %v521 = vsel %vm504, %v467, 0
      %vm523 = vcmask 1043456
      %v525 = vsel %vm523, %v499, 0
      %527 = vmatprep.subr.bf16.mxu0 0
      %528 = vmatpush1.bf16.msra.mxu0 0
      %529 = vmatprep.subr.bf16.mxu0 0
      %530 = vmatpush1.bf16.msra.mxu0 0
      %531 = vmatprep.subr.bf16.mxu0 0
      %532 = vmatpush1.bf16.msra.mxu0 0
      %533 = vmatprep.subr.bf16.mxu0 0
      %534 = vmatpush1.bf16.msra.mxu0 %v525
      %535 = vmatprep.subr.bf16.mxu0 0
      %536 = vmatpush1.bf16.msra.mxu0 %v498
      %537 = vmatprep.subr.bf16.mxu0 0
      %538 = vmatpush1.bf16.msra.mxu0 %v497
      %539 = vmatprep.subr.bf16.mxu0 0
      %540 = vmatpush1.bf16.msra.mxu0 %v496
      %541 = vmatprep.subr.bf16.mxu0 0
      %542 = vmatpush1.bf16.msra.mxu0 %v495
      %543 = vmatprep.subr.bf16.mxu0 0
      %544 = vmatpush2.bf16.msra.mxu0 0
      %545 = vmatprep.subr.bf16.mxu0 0
      %546 = vmatpush2.bf16.msra.mxu0 0
      %547 = vmatprep.subr.bf16.mxu0 0
      %548 = vmatpush2.bf16.msra.mxu0 0
      %549 = vmatprep.subr.bf16.mxu0 0
      %550 = vmatpush2.bf16.msra.mxu0 0
      %551 = vmatprep.subr.bf16.mxu0 0
      %552 = vmatpush2.bf16.msra.mxu0 0
      %553 = vmatprep.subr.bf16.mxu0 0
      %554 = vmatpush2.bf16.msra.mxu0 0
      %555 = vmatprep.subr.bf16.mxu0 0
      %556 = vmatpush2.bf16.msra.mxu0 0
      %557 = vmatprep.subr.bf16.mxu0 0
      %558 = vmatpush2.bf16.msra.mxu0 0
      %559 = vmatprep.mubr.bf16.mxu0 0
      %560 = vmatmul.mubr.bf16.gmra.mxu0 %v506
      %v561 = vpop.f32.mrf.mxu0
      %v562 = vadd.f32 0.0, %v561
      %v563 = vpop.f32.mrf.mxu0
      %v564 = vpop.f32.mrf.mxu0
      %v565 = vadd.f32 0.0, %v564
      %v566 = vpop.f32.mrf.mxu0
      %567 = vmatprep.mubr.bf16.mxu0 0
      %568 = vmatmul.mubr.bf16.gmra.mxu0 %v509
      %v569 = vpop.f32.mrf.mxu0
      %v570 = vadd.f32 0.0, %v569
      %v571 = vpop.f32.mrf.mxu0
      %v572 = vpop.f32.mrf.mxu0
      %v573 = vadd.f32 0.0, %v572
      %v574 = vpop.f32.mrf.mxu0
      %575 = vmatprep.mubr.bf16.mxu0 0
      %576 = vmatmul.mubr.bf16.gmra.mxu0 %v512
      %v577 = vpop.f32.mrf.mxu0
      %v578 = vadd.f32 0.0, %v577
      %v579 = vpop.f32.mrf.mxu0
      %v580 = vpop.f32.mrf.mxu0
      %v581 = vadd.f32 0.0, %v580
      %v582 = vpop.f32.mrf.mxu0
      %583 = vmatprep.mubr.bf16.mxu0 0
      %584 = vmatmul.mubr.bf16.gmra.mxu0 %v515
      %v585 = vpop.f32.mrf.mxu0
      %v586 = vadd.f32 0.0, %v585
      %v587 = vpop.f32.mrf.mxu0
      %v588 = vpop.f32.mrf.mxu0
      %v589 = vadd.f32 0.0, %v588
      %v590 = vpop.f32.mrf.mxu0
      %591 = vmatprep.mubr.bf16.mxu0 0
      %592 = vmatmul.mubr.bf16.gmra.mxu0 %v518
      %v593 = vpop.f32.mrf.mxu0
      %v594 = vadd.f32 0.0, %v593
      %v595 = vpop.f32.mrf.mxu0
      %v596 = vpop.f32.mrf.mxu0
      %v597 = vadd.f32 0.0, %v596
      %v598 = vpop.f32.mrf.mxu0
      %599 = vmatprep.mubr.bf16.mxu0 0
      %600 = vmatmul.mubr.bf16.gmra.mxu0 %v521
      %v601 = vpop.f32.mrf.mxu0
      %v602 = vadd.f32 0.0, %v601
      %v603 = vpop.f32.mrf.mxu0
      %v604 = vpop.f32.mrf.mxu0
      %v605 = vpop.f32.mrf.mxu0
      %606 = vdwg.mxu0
      %vm607 = vcmp.gt.f32.partialorder %v562, 0.0
      %vm608 = vcmp.gt.f32.partialorder %v565, 0.0
      %vm609 = vcmp.gt.f32.partialorder %v570, 0.0
      %vm610 = vcmp.gt.f32.partialorder %v573, 0.0
      %vm611 = vcmp.gt.f32.partialorder %v578, 0.0
      %vm612 = vcmp.gt.f32.partialorder %v581, 0.0
      %vm613 = vcmp.gt.f32.partialorder %v586, 0.0
      %vm614 = vcmp.gt.f32.partialorder %v589, 0.0
      %vm615 = vcmp.gt.f32.partialorder %v594, 0.0
      %vm616 = vcmp.gt.f32.partialorder %v597, 0.0
      %vm617 = vcmp.gt.f32.partialorder %v602, 0.0
      %v618 = vmul.f32 %v562, 0.2
      %v619 = vmul.f32 %v565, 0.2
      %v620 = vmul.f32 %v570, 0.2
      %v621 = vmul.f32 %v573, 0.2
      %v622 = vmul.f32 %v578, 0.2
      %v623 = vmul.f32 %v581, 0.2
      %v624 = vmul.f32 %v586, 0.2
      %v625 = vmul.f32 %v589, 0.2
      %v626 = vmul.f32 %v594, 0.2
      %v627 = vmul.f32 %v597, 0.2
      %v628 = vmul.f32 %v602, 0.2
      %v629 = vsel %vm607, %v562, %v618
      %v630 = vsel %vm608, %v565, %v619
      %v631 = vsel %vm609, %v570, %v620
      %v632 = vsel %vm610, %v573, %v621
      %v633 = vsel %vm611, %v578, %v622
      %v634 = vsel %vm612, %v581, %v623
      %v635 = vsel %vm613, %v586, %v624
      %v636 = vsel %vm614, %v589, %v625
      %v637 = vsel %vm615, %v594, %v626
      %v638 = vsel %vm616, %v597, %v627
      %v639 = vsel %vm617, %v602, %v628
      %v640 = vpack.c.bf16 %v630, %v629
      %v641 = vpack.c.bf16 %v632, %v631
      %v642 = vpack.c.bf16 %v634, %v633
      %v643 = vpack.c.bf16 %v636, %v635
      %v644 = vpack.c.bf16 %v638, %v637
      %v645 = vpack.c.bf16 %v639, %v639
      %v652 = vunpack.c.l.b16 %v640
      %v653 = vunpack.c.h.b16 %v640
      %v654 = vunpack.c.l.b16 %v641
      %v655 = vunpack.c.h.b16 %v641
      %v656 = vunpack.c.l.b16 %v642
      %v657 = vunpack.c.h.b16 %v642
      %v658 = vunpack.c.l.b16 %v643
      %v659 = vunpack.c.h.b16 %v643
      %v660 = vunpack.c.l.b16 %v644
      %v661 = vunpack.c.h.b16 %v644
      %v662 = vunpack.c.l.b16 %v645
      %v663 = vpack.c.b16 %v652, %v652
      %v664 = vpack.c.b16 %v653, %v653
      %v665 = vpack.c.b16 %v654, %v654
      %v666 = vpack.c.b16 %v655, %v655
      %v667 = vpack.c.b16 %v656, %v656
      %v668 = vpack.c.b16 %v657, %v657
      %v669 = vpack.c.b16 %v658, %v658
      %v670 = vpack.c.b16 %v659, %v659
      %v671 = vpack.c.b16 %v660, %v660
      %v672 = vpack.c.b16 %v661, %v661
      %v673 = vpack.c.b16 %v662, %v662
      %685 = vst [vmem:[%s143] sm:$0xf] %v663
      %686 = vst [vmem:[%s143 + $0x4] sm:$0xf] %v664
      %687 = vst [vmem:[%s143 + $0x8] sm:$0xf] %v665
      %688 = vst [vmem:[%s143 + $0xc] sm:$0xf] %v666
      %689 = vst [vmem:[%s143 + $0x10] sm:$0xf] %v667
      %690 = vst [vmem:[%s143 + $0x14] sm:$0xf] %v668
      %691 = vst [vmem:[%s143 + $0x18] sm:$0xf] %v669
      %692 = vst [vmem:[%s143 + $0x1c] sm:$0xf] %v670
      %693 = vst [vmem:[%s143 + $0x20] sm:$0xf] %v671
      %694 = vst [vmem:[%s143 + $0x24] sm:$0xf] %v672
      %695 = vst [vmem:[%s143 + $0x28] sm:$0xf] %v673
      %p696 = scmp.lt.s32.totalorder %s13, 1
      %s697 = scalar_select %p696, %s13, 1
      %s698 = smul.addr %s697, 11
      %s699 = smul.addr %s698, 4
      %s700 = scalar_lea.vmem %s2, %s699
      // Predicated region
      $region29: #{wgan_gp_discriminator_forward.4} parent=27 // pred_check
        %p701 = pneg %p78
      $region30: #{wgan_gp_discriminator_forward.4} parent=27 // pred_check_branch
        %703 = sbr.rel (%p701) target = $region32
      $region31: #{wgan_gp_discriminator_forward.4} parent=27 // pred_region
        _
      $region32: #{wgan_gp_discriminator_forward.4} parent=27 // pred_fallthru
        _
    $region28: #{wgan_gp_discriminator_forward.4} parent=5 // pred_fallthru
      _
    %p704 = scmp.le.s32.totalorder 2, %s8
    // Predicated region
    $region33: #{wgan_gp_discriminator_forward.4} parent=5 // pred_check
      %p705 = pneg %p704
    $region34: #{wgan_gp_discriminator_forward.4} parent=5 // pred_check_branch
      %707 = sbr.rel (%p705) target = $region36
    $region35: #{wgan_gp_discriminator_forward.4} parent=5 // pred_region
      %s708 = ssub.s32 %s8, 2
      // Predicated region
      $region37: #{wgan_gp_discriminator_forward.4} parent=35 // pred_check
        %p709 = pneg %p84
      $region38: #{wgan_gp_discriminator_forward.4} parent=35 // pred_check_branch
        %711 = sbr.rel (%p709) target = $region40
      $region39: #{wgan_gp_discriminator_forward.4} parent=35 // pred_region
        %p712 = scmp.lt.s32.totalorder %s14, 1
        %s713 = scalar_select %p712, %s14, 1
        %s714 = smul.addr %s713, 11
        %s715 = smul.addr %s714, 4
        %s716 = scalar_lea.vmem %s2, %s715
      $region40: #{wgan_gp_discriminator_forward.4} parent=35 // pred_fallthru
        _
    $region36: #{wgan_gp_discriminator_forward.4} parent=5 // pred_fallthru
      _
  $region6: #{wgan_gp_discriminator_forward.4} parent=0 // loop_footer
    %s12 = sadd.s32 1, %s8
  $region7: #{wgan_gp_discriminator_forward.4} parent=0 // loop_footer_branch
    %7 = sbr.rel target = $region3
  $region8: #{wgan_gp_discriminator_forward.4} parent=0 // loop_exit
    _

// kernel: wgan_gp_discriminator_forward.5
$region0: #{wgan_gp_discriminator_forward.5}
  #allocation0 [shape = 'u32[]', space=smem, size = 0x4, offset = 0x4, fixed_abs, tag = 'smem constant byte address 0x4 - core index']
  #allocation1 [shape = 'u32[144,128]{1,0:T(1,128)}', space=vmem, size = 0x12000, scoped, tag = 'internal scratch']
  %s0 = inlined_call_operand.vmem [shape: f32[2,40,64], index: 0, kind: input, shape index: {}]
  %s1 = inlined_call_operand.vmem [shape: bf16[144,128], index: 1, kind: input, shape index: {}]
  %s2 = inlined_call_operand.vmem [shape: f32[32,128], index: 2, kind: input, shape index: {}]
  %s3 = inlined_call_operand.vmem [shape: f32[1,32], index: 3, kind: input, shape index: {}]
  %s4 = inlined_call_operand.vmem [shape: f32[1,128], index: 4, kind: input, shape index: {}]
  %s5 = inlined_call_operand.vmem [shape: f32[2,1,128], index: 5, kind: output, shape index: {}]
  %s6 = sld [smem:[#allocation0]]
  $region53: #{wgan_gp_discriminator_forward.5} parent=0
    _
  %s8 = ssub.s32 1, %s6
  %s9 = scalar_select 0, %s8, %s6
  loop: start=0, step=1, limit=4
  $region2: #{wgan_gp_discriminator_forward.5} parent=0 // loop_pre_header
    _
  $region3: #{wgan_gp_discriminator_forward.5} parent=0 // loop_header
    %s11 = sphi 0, %s15
    %p12 = scmp.ge.s32.totalorder %s11, 4
    %s21 = sphi 0, %s23
    %s24 = sphi 0, %s21
    %s25 = sphi 0, %s24
    %s41 = sphi 0, %s25
    %s45 = sphi 0, %s45
    %s47 = sphi 0, %s45
    %s48 = sphi 0, %s47
    %s62 = sphi 0, %s48
    %s66 = sphi 0, %s66
    %s68 = sphi 0, %s66
    %s69 = sphi 0, %s68
    %s83 = sphi 0, %s69
    %s87 = sphi 0, %s87
    %s89 = sphi 0, %s87
    %s90 = sphi 0, %s89
    %s104 = sphi 0, %s90
    %s108 = sphi 0, %s108
    %s110 = sphi 0, %s108
    %s111 = sphi 0, %s110
    %s125 = sphi 0, %s111
    %s131 = sphi 0, %s133
    %s134 = sphi 0, %s131
    %s135 = sphi 0, %s134
    %s151 = sphi 0, %s135
  $region4: #{wgan_gp_discriminator_forward.5} parent=0 // loop_header_branch
    %14 = sbr.rel (%p12) target = $region8
  $region5: #{wgan_gp_discriminator_forward.5} parent=0 // loop_body
    %s16 = ssub.s32 %s11, 1
    %s17 = ssub.s32 %s11, 2
    %s18 = sadd.s32 %s11, 1
    %s19 = ssub.s32 %s11, %s18
    %p20 = scmp.eq.s32.totalorder %s19, 0
    %s22 = sadd.s32 %s21, 1
    %s23 = scalar_select %p20, %s21, %s22
    %p26 = pneg %p20
    %p27 = scmp.eq.s32.totalorder %s11, 1
    %p28 = por %p26, %p27
    %p29 = scmp.ne.s32.totalorder %s21, %s24
    %p30 = scmp.eq.s32.totalorder %s11, 0
    %p31 = por %p29, %p30
    %p32 = scmp.ne.s32.totalorder %s21, %s24
    %p33 = scmp.eq.s32.totalorder %s16, 1
    %p34 = por %p32, %p33
    %p35 = scmp.ne.s32.totalorder %s24, %s25
    %p36 = scmp.eq.s32.totalorder %s16, 0
    %p37 = por %p35, %p36
    %p38 = scmp.ne.s32.totalorder %s24, %s25
    %p39 = scmp.eq.s32.totalorder %s17, 1
    %p40 = por %p38, %p39
    %p42 = scmp.ne.s32.totalorder %s25, %s41
    %p43 = scmp.eq.s32.totalorder %s17, 0
    %p44 = por %p42, %p43
    %s46 = sadd.s32 %s45, 1
    %p49 = scmp.eq.s32.totalorder %s11, 1
    %p50 = scmp.ne.s32.totalorder %s45, %s47
    %p51 = scmp.eq.s32.totalorder %s11, 0
    %p52 = por %p50, %p51
    %p53 = scmp.ne.s32.totalorder %s45, %s47
    %p54 = scmp.eq.s32.totalorder %s16, 1
    %p55 = por %p53, %p54
    %p56 = scmp.ne.s32.totalorder %s47, %s48
    %p57 = scmp.eq.s32.totalorder %s16, 0
    %p58 = por %p56, %p57
    %p59 = scmp.ne.s32.totalorder %s47, %s48
    %p60 = scmp.eq.s32.totalorder %s17, 1
    %p61 = por %p59, %p60
    %p63 = scmp.ne.s32.totalorder %s48, %s62
    %p64 = scmp.eq.s32.totalorder %s17, 0
    %p65 = por %p63, %p64
    %s67 = sadd.s32 %s66, 1
    %p70 = scmp.eq.s32.totalorder %s11, 1
    %p71 = scmp.ne.s32.totalorder %s66, %s68
    %p72 = scmp.eq.s32.totalorder %s11, 0
    %p73 = por %p71, %p72
    %p74 = scmp.ne.s32.totalorder %s66, %s68
    %p75 = scmp.eq.s32.totalorder %s16, 1
    %p76 = por %p74, %p75
    %p77 = scmp.ne.s32.totalorder %s68, %s69
    %p78 = scmp.eq.s32.totalorder %s16, 0
    %p79 = por %p77, %p78
    %p80 = scmp.ne.s32.totalorder %s68, %s69
    %p81 = scmp.eq.s32.totalorder %s17, 1
    %p82 = por %p80, %p81
    %p84 = scmp.ne.s32.totalorder %s69, %s83
    %p85 = scmp.eq.s32.totalorder %s17, 0
    %p86 = por %p84, %p85
    %s88 = sadd.s32 %s87, 1
    %p91 = scmp.eq.s32.totalorder %s11, 1
    %p92 = scmp.ne.s32.totalorder %s87, %s89
    %p93 = scmp.eq.s32.totalorder %s11, 0
    %p94 = por %p92, %p93
    %p95 = scmp.ne.s32.totalorder %s87, %s89
    %p96 = scmp.eq.s32.totalorder %s16, 1
    %p97 = por %p95, %p96
    %p98 = scmp.ne.s32.totalorder %s89, %s90
    %p99 = scmp.eq.s32.totalorder %s16, 0
    %p100 = por %p98, %p99
    %p101 = scmp.ne.s32.totalorder %s89, %s90
    %p102 = scmp.eq.s32.totalorder %s17, 1
    %p103 = por %p101, %p102
    %p105 = scmp.ne.s32.totalorder %s90, %s104
    %p106 = scmp.eq.s32.totalorder %s17, 0
    %p107 = por %p105, %p106
    %s109 = sadd.s32 %s108, 1
    %p112 = scmp.eq.s32.totalorder %s11, 1
    %p113 = scmp.ne.s32.totalorder %s108, %s110
    %p114 = scmp.eq.s32.totalorder %s11, 0
    %p115 = por %p113, %p114
    %p116 = scmp.ne.s32.totalorder %s108, %s110
    %p117 = scmp.eq.s32.totalorder %s16, 1
    %p118 = por %p116, %p117
    %p119 = scmp.ne.s32.totalorder %s110, %s111
    %p120 = scmp.eq.s32.totalorder %s16, 0
    %p121 = por %p119, %p120
    %p122 = scmp.ne.s32.totalorder %s110, %s111
    %p123 = scmp.eq.s32.totalorder %s17, 1
    %p124 = por %p122, %p123
    %p126 = scmp.ne.s32.totalorder %s111, %s125
    %p127 = scmp.eq.s32.totalorder %s17, 0
    %p128 = por %p126, %p127
    %s129 = ssub.s32 %s11, %s18
    %p130 = scmp.eq.s32.totalorder %s129, 0
    %s132 = sadd.s32 %s131, 1
    %s133 = scalar_select %p130, %s131, %s132
    %p136 = pneg %p130
    %p137 = scmp.eq.s32.totalorder %s11, 1
    %p138 = por %p136, %p137
    %p139 = scmp.ne.s32.totalorder %s131, %s134
    %p140 = scmp.eq.s32.totalorder %s11, 0
    %p141 = por %p139, %p140
    %p142 = scmp.ne.s32.totalorder %s131, %s134
    %p143 = scmp.eq.s32.totalorder %s16, 1
    %p144 = por %p142, %p143
    %p145 = scmp.ne.s32.totalorder %s134, %s135
    %p146 = scmp.eq.s32.totalorder %s16, 0
    %p147 = por %p145, %p146
    %p148 = scmp.ne.s32.totalorder %s134, %s135
    %p149 = scmp.eq.s32.totalorder %s17, 1
    %p150 = por %p148, %p149
    %p152 = scmp.ne.s32.totalorder %s135, %s151
    %p153 = scmp.eq.s32.totalorder %s17, 0
    %p154 = por %p152, %p153
    %p155 = scmp.le.s32.totalorder 1, %s11
    %p156 = scmp.lt.s32.totalorder %s11, 3
    %p157 = pnand %p155, %p156
    %p158 = pneg %p157
    // Predicated region
    $region9: #{wgan_gp_discriminator_forward.5} parent=5 // pred_check
      _
    $region10: #{wgan_gp_discriminator_forward.5} parent=5 // pred_check_branch
      %160 = sbr.rel (%p157) target = $region12
    $region11: #{wgan_gp_discriminator_forward.5} parent=5 // pred_region
      %s161 = ssub.s32 %s11, 1
      // Predicated region
      $region13: #{wgan_gp_discriminator_forward.5} parent=11 // pred_check
        %p162 = pneg %p58
      $region14: #{wgan_gp_discriminator_forward.5} parent=11 // pred_check_branch
        %164 = sbr.rel (%p162) target = $region16
      $region15: #{wgan_gp_discriminator_forward.5} parent=11 // pred_region
        _
      $region16: #{wgan_gp_discriminator_forward.5} parent=11 // pred_fallthru
        _
      // Predicated region
      $region17: #{wgan_gp_discriminator_forward.5} parent=11 // pred_check
        %p165 = pneg %p79
      $region18: #{wgan_gp_discriminator_forward.5} parent=11 // pred_check_branch
        %167 = sbr.rel (%p165) target = $region20
      $region19: #{wgan_gp_discriminator_forward.5} parent=11 // pred_region
        _
      $region20: #{wgan_gp_discriminator_forward.5} parent=11 // pred_fallthru
        _
      // Predicated region
      $region21: #{wgan_gp_discriminator_forward.5} parent=11 // pred_check
        %p168 = pneg %p100
      $region22: #{wgan_gp_discriminator_forward.5} parent=11 // pred_check_branch
        %170 = sbr.rel (%p168) target = $region24
      $region23: #{wgan_gp_discriminator_forward.5} parent=11 // pred_region
        _
      $region24: #{wgan_gp_discriminator_forward.5} parent=11 // pred_fallthru
        _
      // Predicated region
      $region25: #{wgan_gp_discriminator_forward.5} parent=11 // pred_check
        %p171 = pneg %p121
      $region26: #{wgan_gp_discriminator_forward.5} parent=11 // pred_check_branch
        %173 = sbr.rel (%p171) target = $region28
      $region27: #{wgan_gp_discriminator_forward.5} parent=11 // pred_region
        _
      $region28: #{wgan_gp_discriminator_forward.5} parent=11 // pred_fallthru
        _
    $region12: #{wgan_gp_discriminator_forward.5} parent=5 // pred_fallthru
      _
    %p174 = scmp.lt.s32.totalorder %s11, 2
    // Predicated region
    $region29: #{wgan_gp_discriminator_forward.5} parent=5 // pred_check
      %p175 = pneg %p174
    $region30: #{wgan_gp_discriminator_forward.5} parent=5 // pred_check_branch
      %177 = sbr.rel (%p175) target = $region32
    $region31: #{wgan_gp_discriminator_forward.5} parent=5 // pred_region
      // Predicated region
      $region33: #{wgan_gp_discriminator_forward.5} parent=31 // pred_check
        %p178 = pneg %p31
      $region34: #{wgan_gp_discriminator_forward.5} parent=31 // pred_check_branch
        %180 = sbr.rel (%p178) target = $region36
      $region35: #{wgan_gp_discriminator_forward.5} parent=31 // pred_region
        %p181 = scmp.lt.s32.totalorder %s11, 1
        %s182 = scalar_select %p181, %s11, 1
        %s183 = smul.addr %s182, 5
        %s184 = smul.addr %s183, 8
        %s185 = scalar_lea.vmem %s0, %s184
      $region36: #{wgan_gp_discriminator_forward.5} parent=31 // pred_fallthru
        _
    $region32: #{wgan_gp_discriminator_forward.5} parent=5 // pred_fallthru
      _
    %p186 = scmp.le.s32.totalorder 1, %s11
    %p187 = scmp.lt.s32.totalorder %s11, 3
    %p188 = pnand %p186, %p187
    %p189 = pneg %p188
    // Predicated region
    $region37: #{wgan_gp_discriminator_forward.5} parent=5 // pred_check
      _
    $region38: #{wgan_gp_discriminator_forward.5} parent=5 // pred_check_branch
      %191 = sbr.rel (%p188) target = $region40
    $region39: #{wgan_gp_discriminator_forward.5} parent=5 // pred_region
      %s192 = ssub.s32 %s11, 1
      %p193 = scmp.lt.s32.totalorder %s16, 1
      %s194 = scalar_select %p193, %s16, 1
      %s195 = smul.addr %s194, 5
      %s196 = smul.addr %s195, 8
      %s197 = scalar_lea.vmem %s0, %s196
      %p198 = pneg %p37
      %p199 = pneg %p34
      %p200 = pneg %p58
      %p201 = pneg %p55
      %p202 = pneg %p79
      %p203 = pneg %p76
      %p204 = pneg %p100
      %p205 = pneg %p97
      %p206 = pneg %p121
      %p207 = pneg %p118
      %p208 = pneg %p147
      %p209 = pneg %p144
      %p210 = scmp.lt.s32.totalorder %s16, 1
      %s211 = scalar_select %p210, %s16, 1
      %s212 = scalar_lea.vmem %s5, %s211
      %p213 = scmp.lt.s32.totalorder %s16, 1
      %s214 = scalar_select %p213, %s16, 1
      %s215 = smul.addr %s214, 5
      %s216 = smul.addr %s215, 8
      %s217 = scalar_lea.vmem %s0, %s216
      %p218 = scmp.lt.s32.totalorder %s16, 1
      %s219 = scalar_select %p218, %s16, 1
      %s220 = scalar_lea.vmem %s5, %s219
      %v222 = vld [vmem:[%s217] sm:$0xff]
      %v223 = vld [vmem:[%s217 + $0x8] sm:$0xff]
      %v224 = vld [vmem:[%s217 + $0x10] sm:$0xff]
      %v225 = vld [vmem:[%s217 + $0x18] sm:$0xff]
      %v226 = vld [vmem:[%s217 + $0x1] sm:$0xff]
      %v227 = vld [vmem:[%s217 + $0x9] sm:$0xff]
      %v228 = vld [vmem:[%s217 + $0x11] sm:$0xff]
      %v229 = vld [vmem:[%s217 + $0x19] sm:$0xff]
      %v230 = vld [vmem:[%s217 + $0x5] sm:$0xff]
      %v231 = vld [vmem:[%s217 + $0xd] sm:$0xff]
      %v232 = vld [vmem:[%s217 + $0x15] sm:$0xff]
      %v233 = vld [vmem:[%s217 + $0x1d] sm:$0xff]
      %v234 = vld [vmem:[%s217 + $0x6] sm:$0xff]
      %v235 = vld [vmem:[%s217 + $0xe] sm:$0xff]
      %v236 = vld [vmem:[%s217 + $0x16] sm:$0xff]
      %v237 = vld [vmem:[%s217 + $0x1e] sm:$0xff]
      %242 = vrot.lane.b32.xlu0 %v226, 32
      %v243 = vpop.permute.xlu0 %242
      %244 = vrot.lane.b32.xlu0 %v227, 32
      %v245 = vpop.permute.xlu0 %244
      %246 = vrot.lane.b32.xlu0 %v228, 32
      %v247 = vpop.permute.xlu0 %246
      %248 = vrot.lane.b32.xlu0 %v229, 32
      %v249 = vpop.permute.xlu0 %248
      %258 = vrot.lane.b32.xlu0 %v222, 16
      %v259 = vpop.permute.xlu0 %258
      %260 = vrot.lane.b32.xlu0 %v223, 16
      %v261 = vpop.permute.xlu0 %260
      %262 = vrot.lane.b32.xlu0 %v224, 16
      %v263 = vpop.permute.xlu0 %262
      %264 = vrot.lane.b32.xlu0 %v225, 16
      %v265 = vpop.permute.xlu0 %264
      %270 = vrot.lane.b32.xlu0 %v226, 48
      %v271 = vpop.permute.xlu0 %270
      %272 = vrot.lane.b32.xlu0 %v227, 48
      %v273 = vpop.permute.xlu0 %272
      %274 = vrot.lane.b32.xlu0 %v228, 48
      %v275 = vpop.permute.xlu0 %274
      %276 = vrot.lane.b32.xlu0 %v229, 48
      %v277 = vpop.permute.xlu0 %276
      %286 = vrot.lane.b32.xlu0 %v230, 96
      %v287 = vpop.permute.xlu0 %286
      %288 = vrot.lane.b32.xlu0 %v231, 96
      %v289 = vpop.permute.xlu0 %288
      %290 = vrot.lane.b32.xlu0 %v232, 96
      %v291 = vpop.permute.xlu0 %290
      %292 = vrot.lane.b32.xlu0 %v233, 96
      %v293 = vpop.permute.xlu0 %292
      %vm298 = vcmask 130048
      %vm299 = vcmask 261120
      %v300 = vsel %vm299, %v222, %v243
      %v301 = vsel %vm299, %v223, %v245
      %v302 = vsel %vm299, %v224, %v247
      %v303 = vsel %vm299, %v225, %v249
      %vm304 = vcmask 392192
      %v305 = vsel %vm304, %v300, %v259
      %v306 = vsel %vm304, %v301, %v261
      %v307 = vsel %vm304, %v302, %v263
      %v308 = vsel %vm304, %v303, %v265
      %vm309 = vcmask 523264
      %v310 = vsel %vm309, %v305, %v259
      %v311 = vsel %vm309, %v306, %v261
      %v312 = vsel %vm309, %v307, %v263
      %v313 = vsel %vm309, %v308, %v265
      %vm314 = vcmask 654336
      %v315 = vsel %vm314, %v310, %v271
      %v316 = vsel %vm314, %v311, %v273
      %v317 = vsel %vm314, %v312, %v275
      %v318 = vsel %vm314, %v313, %v277
      %vm319 = vcmask 785408
      %v320 = vsel %vm319, %v315, %v287
      %v321 = vsel %vm319, %v316, %v289
      %v322 = vsel %vm319, %v317, %v291
      %v323 = vsel %vm319, %v318, %v293
      %vm324 = vcmask 916480
      %v325 = vsel %vm324, %v320, %v287
      %v326 = vsel %vm324, %v321, %v289
      %v327 = vsel %vm324, %v322, %v291
      %v328 = vsel %vm324, %v323, %v293
      %v329 = vpack.c.bf16 %v326, %v325
      %v330 = vpack.c.bf16 %v235, %v234
      %v331 = vpack.c.bf16 %v328, %v327
      %v332 = vpack.c.bf16 %v237, %v236
      %v333 = vld [vmem:[%s1] sm:$0xf]
      %v334 = vld [vmem:[%s1 + $0x4] sm:$0xf]
      %v335 = vld [vmem:[%s1 + $0x8] sm:$0xf]
      %v336 = vld [vmem:[%s1 + $0xc] sm:$0xf]
      %v337 = vld [vmem:[%s1 + $0x10] sm:$0xf]
      %v338 = vld [vmem:[%s1 + $0x14] sm:$0xf]
      %v339 = vld [vmem:[%s1 + $0x18] sm:$0xf]
      %v340 = vld [vmem:[%s1 + $0x1c] sm:$0xf]
      %v341 = vld [vmem:[%s1 + $0x20] sm:$0xf]
      %v342 = vld [vmem:[%s1 + $0x24] sm:$0xf]
      %v343 = vld [vmem:[%s1 + $0x28] sm:$0xf]
      %v344 = vld [vmem:[%s1 + $0x2c] sm:$0xf]
      %v345 = vld [vmem:[%s1 + $0x30] sm:$0xf]
      %v346 = vld [vmem:[%s1 + $0x34] sm:$0xf]
      %v347 = vld [vmem:[%s1 + $0x38] sm:$0xf]
      %v348 = vld [vmem:[%s1 + $0x3c] sm:$0xf]
      %v349 = vld [vmem:[%s1 + $0x40] sm:$0xf]
      %v350 = vld [vmem:[%s1 + $0x44] sm:$0xf]
      %v369 = vunpack.c.l.b16 %v333
      %v370 = vunpack.c.l.b16 %v334
      %v371 = vunpack.c.l.b16 %v335
      %v372 = vunpack.c.l.b16 %v336
      %v373 = vunpack.c.l.b16 %v337
      %v374 = vunpack.c.l.b16 %v338
      %v375 = vunpack.c.l.b16 %v339
      %v376 = vunpack.c.l.b16 %v340
      %v377 = vunpack.c.l.b16 %v341
      %v378 = vunpack.c.l.b16 %v342
      %v379 = vunpack.c.l.b16 %v343
      %v380 = vunpack.c.l.b16 %v344
      %v381 = vunpack.c.l.b16 %v345
      %v382 = vunpack.c.l.b16 %v346
      %v383 = vunpack.c.l.b16 %v347
      %v384 = vunpack.c.l.b16 %v348
      %v385 = vunpack.c.l.b16 %v349
      %v386 = vunpack.c.l.b16 %v350
      %v387 = vpack.c.b16 %v370, %v369
      %v388 = vpack.c.b16 %v372, %v371
      %v389 = vpack.c.b16 %v374, %v373
      %v390 = vpack.c.b16 %v376, %v375
      %v391 = vpack.c.b16 %v378, %v377
      %v392 = vpack.c.b16 %v380, %v379
      %v393 = vpack.c.b16 %v382, %v381
      %v394 = vpack.c.b16 %v384, %v383
      %v395 = vpack.c.b16 %v386, %v385
      %v406 = vsel %vm298, %v330, 0
      %v409 = vsel %vm298, %v332, 0
      %411 = vmatprep.subr.bf16.mxu0 0
      %412 = vmatpush1.bf16.msra.mxu0 %v394
      %413 = vmatprep.subr.bf16.mxu0 0
      %414 = vmatpush1.bf16.msra.mxu0 %v393
      %415 = vmatprep.subr.bf16.mxu0 0
      %416 = vmatpush1.bf16.msra.mxu0 %v392
      %417 = vmatprep.subr.bf16.mxu0 0
      %418 = vmatpush1.bf16.msra.mxu0 %v391
      %419 = vmatprep.subr.bf16.mxu0 0
      %420 = vmatpush1.bf16.msra.mxu0 %v390
      %421 = vmatprep.subr.bf16.mxu0 0
      %422 = vmatpush1.bf16.msra.mxu0 %v389
      %423 = vmatprep.subr.bf16.mxu0 0
      %424 = vmatpush1.bf16.msra.mxu0 %v388
      %425 = vmatprep.subr.bf16.mxu0 0
      %426 = vmatpush1.bf16.msra.mxu0 %v387
      %427 = vmatprep.subr.bf16.mxu0 0
      %428 = vmatpush2.bf16.msra.mxu0 0
      %429 = vmatprep.subr.bf16.mxu0 0
      %430 = vmatpush2.bf16.msra.mxu0 0
      %431 = vmatprep.subr.bf16.mxu0 0
      %432 = vmatpush2.bf16.msra.mxu0 0
      %433 = vmatprep.subr.bf16.mxu0 0
      %434 = vmatpush2.bf16.msra.mxu0 0
      %435 = vmatprep.subr.bf16.mxu0 0
      %436 = vmatpush2.bf16.msra.mxu0 0
      %437 = vmatprep.subr.bf16.mxu0 0
      %438 = vmatpush2.bf16.msra.mxu0 0
      %439 = vmatprep.subr.bf16.mxu0 0
      %440 = vmatpush2.bf16.msra.mxu0 0
      %441 = vmatprep.subr.bf16.mxu0 0
      %442 = vmatpush2.bf16.msra.mxu0 %v395
      %443 = vmatprep.mubr.bf16.mxu0 %v406
      %444 = vmatmul.mubr.bf16.gmra.mxu0 %v329
      %v445 = vpop.f32.mrf.mxu0
      %v446 = vadd.f32 0.0, %v445
      %v447 = vpop.f32.mrf.mxu0
      %v448 = vpop.f32.mrf.mxu0
      %v449 = vadd.f32 0.0, %v448
      %v450 = vpop.f32.mrf.mxu0
      %451 = vmatprep.mubr.bf16.mxu0 %v409
      %452 = vmatmul.mubr.bf16.gmra.mxu0 %v331
      %v453 = vpop.f32.mrf.mxu0
      %v454 = vadd.f32 0.0, %v453
      %v455 = vpop.f32.mrf.mxu0
      %v456 = vpop.f32.mrf.mxu0
      %v457 = vadd.f32 0.0, %v456
      %v458 = vpop.f32.mrf.mxu0
      %459 = vdwg.mxu0
      %vm460 = vcmp.gt.f32.partialorder %v446, 0.0
      %vm461 = vcmp.gt.f32.partialorder %v449, 0.0
      %vm462 = vcmp.gt.f32.partialorder %v454, 0.0
      %vm463 = vcmp.gt.f32.partialorder %v457, 0.0
      %v464 = vmul.f32 %v446, 0.2
      %v465 = vmul.f32 %v449, 0.2
      %v466 = vmul.f32 %v454, 0.2
      %v467 = vmul.f32 %v457, 0.2
      %v468 = vsel %vm460, %v446, %v464
      %v469 = vsel %vm461, %v449, %v465
      %v470 = vsel %vm462, %v454, %v466
      %v471 = vsel %vm463, %v457, %v467
      %v472 = vld [vmem:[%s2] sm:$0xff]
      %v473 = vld [vmem:[%s2 + $0x8] sm:$0xff]
      %v474 = vld [vmem:[%s2 + $0x10] sm:$0xff]
      %v475 = vld [vmem:[%s2 + $0x18] sm:$0xff]
      %v476 = vmul.f32 %v468, %v472
      %v477 = vmul.f32 %v469, %v473
      %v478 = vmul.f32 %v470, %v474
      %v479 = vmul.f32 %v471, %v475
      %v480 = vld [vmem:[%s3] sm:$0x1]
      %v482 = vsel %vm299, %v480, 0
      %484 = vmatprep.subr.mxu0 0.0
      %485 = vmatpush1.msra.mxu0 0.0
      %486 = vmatprep.subr.mxu0 0.0
      %487 = vmatpush1.msra.mxu0 0.0
      %488 = vmatprep.subr.mxu0 0.0
      %489 = vmatpush1.msra.mxu0 0.0
      %490 = vmatprep.subr.mxu0 0.0
      %491 = vmatpush1.msra.mxu0 0.0
      %492 = vmatprep.subr.mxu0 0.0
      %493 = vmatpush1.msra.mxu0 0.0
      %494 = vmatprep.subr.mxu0 0.0
      %495 = vmatpush1.msra.mxu0 0.0
      %496 = vmatprep.subr.mxu0 0.0
      %497 = vmatpush1.msra.mxu0 0.0
      %498 = vmatprep.subr.mxu0 0.0
      %499 = vmatpush1.msra.mxu0 0.0
      %500 = vmatprep.subr.mxu0 0.0
      %501 = vmatpush1.msra.mxu0 0.0
      %502 = vmatprep.subr.mxu0 0.0
      %503 = vmatpush1.msra.mxu0 0.0
      %504 = vmatprep.subr.mxu0 0.0
      %505 = vmatpush1.msra.mxu0 0.0
      %506 = vmatprep.subr.mxu0 0.0
      %507 = vmatpush1.msra.mxu0 0.0
      %508 = vmatprep.subr.mxu0 0.0
      %509 = vmatpush1.msra.mxu0 %v479
      %510 = vmatprep.subr.mxu0 0.0
      %511 = vmatpush1.msra.mxu0 %v478
      %512 = vmatprep.subr.mxu0 0.0
      %513 = vmatpush1.msra.mxu0 %v477
      %514 = vmatprep.subr.mxu0 0.0
      %515 = vmatpush1.msra.mxu0 %v476
      %516 = vmatprep.subr.mxu0 0.0
      %517 = vmatpush2.msra.mxu0 0.0
      %518 = vmatprep.subr.mxu0 0.0
      %519 = vmatpush2.msra.mxu0 0.0
      %520 = vmatprep.subr.mxu0 0.0
      %521 = vmatpush2.msra.mxu0 0.0
      %522 = vmatprep.subr.mxu0 0.0
      %523 = vmatpush2.msra.mxu0 0.0
      %524 = vmatprep.subr.mxu0 0.0
      %525 = vmatpush2.msra.mxu0 0.0
      %526 = vmatprep.subr.mxu0 0.0
      %527 = vmatpush2.msra.mxu0 0.0
      %528 = vmatprep.subr.mxu0 0.0
      %529 = vmatpush2.msra.mxu0 0.0
      %530 = vmatprep.subr.mxu0 0.0
      %531 = vmatpush2.msra.mxu0 0.0
      %532 = vmatprep.subr.mxu0 0.0
      %533 = vmatpush2.msra.mxu0 0.0
      %534 = vmatprep.subr.mxu0 0.0
      %535 = vmatpush2.msra.mxu0 0.0
      %536 = vmatprep.subr.mxu0 0.0
      %537 = vmatpush2.msra.mxu0 0.0
      %538 = vmatprep.subr.mxu0 0.0
      %539 = vmatpush2.msra.mxu0 0.0
      %540 = vmatprep.subr.mxu0 0.0
      %541 = vmatpush2.msra.mxu0 0.0
      %542 = vmatprep.subr.mxu0 0.0
      %543 = vmatpush2.msra.mxu0 0.0
      %544 = vmatprep.subr.mxu0 0.0
      %545 = vmatpush2.msra.mxu0 0.0
      %546 = vmatprep.subr.mxu0 0.0
      %547 = vmatpush2.msra.mxu0 0.0
      %548 = vmatprep.mubr.f32.mxu0 0.0
      %549 = vmatmul.mubr.f32.gmra.mxu0 %v482
      %v550 = vpop.f32.mrf.mxu0
      %v551 = vadd.f32 0.0, %v550
      %v552 = vpop.f32.mrf.mxu0
      %553 = vdwg.mxu0
      %vm554 = vcmask 1040384
      %v555 = vsel %vm554, %v551, 0.0
      %556 = vadd.xlane.f32.xlu0 %v555
      %v557 = vpop.xlane.xlu0 %556
      %v558 = vld [vmem:[%s4] sm:$0x1]
      %v559 = vadd.f32 %v557, %v558
      %560 = vst [vmem:[%s220] sm:$0x1] %v559
      %p561 = scmp.lt.s32.totalorder %s16, 1
      %s562 = scalar_select %p561, %s16, 1
      %s563 = scalar_lea.vmem %s5, %s562
      // Predicated region
      $region41: #{wgan_gp_discriminator_forward.5} parent=39 // pred_check
        %p564 = pneg %p144
      $region42: #{wgan_gp_discriminator_forward.5} parent=39 // pred_check_branch
        %566 = sbr.rel (%p564) target = $region44
      $region43: #{wgan_gp_discriminator_forward.5} parent=39 // pred_region
        _
      $region44: #{wgan_gp_discriminator_forward.5} parent=39 // pred_fallthru
        _
    $region40: #{wgan_gp_discriminator_forward.5} parent=5 // pred_fallthru
      _
    %p567 = scmp.le.s32.totalorder 2, %s11
    // Predicated region
    $region45: #{wgan_gp_discriminator_forward.5} parent=5 // pred_check
      %p568 = pneg %p567
    $region46: #{wgan_gp_discriminator_forward.5} parent=5 // pred_check_branch
      %570 = sbr.rel (%p568) target = $region48
    $region47: #{wgan_gp_discriminator_forward.5} parent=5 // pred_region
      %s571 = ssub.s32 %s11, 2
      // Predicated region
      $region49: #{wgan_gp_discriminator_forward.5} parent=47 // pred_check
        %p572 = pneg %p150
      $region50: #{wgan_gp_discriminator_forward.5} parent=47 // pred_check_branch
        %574 = sbr.rel (%p572) target = $region52
      $region51: #{wgan_gp_discriminator_forward.5} parent=47 // pred_region
        %p575 = scmp.lt.s32.totalorder %s17, 1
        %s576 = scalar_select %p575, %s17, 1
        %s577 = scalar_lea.vmem %s5, %s576
      $region52: #{wgan_gp_discriminator_forward.5} parent=47 // pred_fallthru
        _
    $region48: #{wgan_gp_discriminator_forward.5} parent=5 // pred_fallthru
      _
  $region6: #{wgan_gp_discriminator_forward.5} parent=0 // loop_footer
    %s15 = sadd.s32 1, %s11
  $region7: #{wgan_gp_discriminator_forward.5} parent=0 // loop_footer_branch
    %10 = sbr.rel target = $region3
  $region8: #{wgan_gp_discriminator_forward.5} parent=0 // loop_exit
    _

</llo_original>
